<compile_context>
chip_gen: v6e
topology: v6e:2x2x1
jax: 0.10.0
libtpu: 0.0.40
codegen_flags: <defaults>
</compile_context>

<pallas_src>
import jax
import jax.numpy as jnp
from jax.experimental import pallas as pl
from jax.experimental.pallas import tpu as pltpu

EPS = 1e-5  # nn.BatchNorm2d default eps

# Flip to jnp.bfloat16 on v6e/v7x for MXU peak throughput (accumulation stays
# f32 via preferred_element_type); f32 keeps the 1e-3 correctness check tight.
_MXU_DTYPE = jnp.float32


def _bn_scale_shift(s_sum, s_sq, count, gamma, beta):
    """Fold per-image (sum, sum_sq) partials into per-channel affine params.

    Tiny (Cout,) glue: y = x*scale + shift == (x - mean)*rsqrt(var+eps)*g + b.
    """
    total = jnp.sum(s_sum, axis=(0, 2))                 # (Cout,)
    total_sq = jnp.sum(s_sq, axis=(0, 2))
    mean = total / count
    var = jnp.maximum(total_sq / count - mean * mean, 0.0)   # biased variance
    scale = gamma * jax.lax.rsqrt(var + EPS)
    shift = beta - mean * scale
    return (scale.reshape(-1, 1).astype(jnp.float32),
            shift.reshape(-1, 1).astype(jnp.float32))


def basic_block_forward(x_nchw, params):
    """BasicBlock forward (stride=1, projection shortcut since Cin != Cout)."""
    w1, g1, b1, w2, g2, b2, ws, gs, bs = params
    N, Cin, H, W = x_nchw.shape
    Cout = w1.shape[0]
    HW = H * W
    PITCH = W + 2                     # row pitch of the zero-padded feature map
    PAD = (H + 2) * PITCH             # flattened padded spatial extent
    P = H * PITCH - 2                 # pitched conv-output length (valid fits)
    HEAD = W + 3                      # zeros before/after the pitched output
    COUNT = N * HW                    # BatchNorm element count per channel

    # ---------------- in-kernel helpers (closures over H, W) ----------------
    def conv3x3(feat_pad, w_mat):
        """feat_pad: (C, PAD) zero-padded pitch-(W+2) feature map (channels on
        sublanes, flat spatial on lanes).  w_mat: (Cout, 9*C) with columns
        ordered (dy, dx, c).  Single big-K MXU matmul; the (Cout, P) output is
        in pitched layout (columns with x >= W are garbage)."""
        taps = [feat_pad[:, dy * PITCH + dx: dy * PITCH + dx + P]
                for dy in range(3) for dx in range(3)]
        a = jnp.concatenate(taps, axis=0)                     # (9*C, P)
        return jnp.dot(w_mat.astype(_MXU_DTYPE), a.astype(_MXU_DTYPE),
                       preferred_element_type=jnp.float32)

    # -------- Pass 1: conv1 (raw) + its stats, shortcut stats only ----------
    def conv1_kernel(x_ref, w1_ref, ws_ref, mask_ref,
                     z1_ref, s1s_ref, s1q_ref, sss_ref, ssq_ref):
        s = x_ref[0]                                          # (Cin, PAD)
        out = conv3x3(s, w1_ref[...])                         # (Cout, P)
        zeros = jnp.zeros((out.shape[0], HEAD), jnp.float32)
        # Re-pad conv1's output into the pitch-(W+2) layout so pass 2 can take
        # its taps directly from the z1 block (mask kills pitch garbage).
        z1p = jnp.concatenate([zeros, out, zeros], axis=1) * mask_ref[...]
        z1_ref[0] = z1p                                       # (Cout, PAD)
        s1s_ref[0] = jnp.sum(z1p, axis=1, keepdims=True)
        s1q_ref[0] = jnp.sum(z1p * z1p, axis=1, keepdims=True)
        # Projection shortcut 1x1 conv: statistics only (padding columns of s
        # are zero, so they contribute nothing); activations are recomputed in
        # pass 3 instead of round-tripping HBM.
        zs = jnp.dot(ws_ref[...].astype(_MXU_DTYPE), s.astype(_MXU_DTYPE),
                     preferred_element_type=jnp.float32)      # (Cout, PAD)
        sss_ref[0] = jnp.sum(zs, axis=1, keepdims=True)
        ssq_ref[0] = jnp.sum(zs * zs, axis=1, keepdims=True)

    # -------- Pass 2: fused BN1 + ReLU, conv2 (raw) + its stats -------------
    def conv2_kernel(z1_ref, sc1_ref, sh1_ref, w2_ref, mask_ref,
                     z2_ref, s2s_ref, s2q_ref):
        z1 = z1_ref[0]                                        # (Cout, PAD)
        # BN1 + ReLU; the mask restores exact zeros at padding / pitch-garbage
        # positions so z1 keeps acting as a zero-padded feature map.
        y1 = jnp.maximum(z1 * sc1_ref[...] + sh1_ref[...], 0.0) * mask_ref[...]
        out = conv3x3(y1, w2_ref[...])                        # (Cout, P)
        # De-pitch: keep the W valid columns of each of the H pitched rows.
        z2c = jnp.concatenate(
            [out[:, y * PITCH: y * PITCH + W] for y in range(H)], axis=1)
        z2_ref[0] = z2c                                       # (Cout, HW)
        s2s_ref[0] = jnp.sum(z2c, axis=1, keepdims=True)
        s2q_ref[0] = jnp.sum(z2c * z2c, axis=1, keepdims=True)

    # -------- Pass 3: BN2, shortcut conv + BN_s, residual add, ReLU ---------
    def bn_add_relu_kernel(z2_ref, x_ref, ws_ref, sc2_ref, sh2_ref,
                           scs_ref, shs_ref, o_ref):
        r = z2_ref[0] * sc2_ref[...] + sh2_ref[...]           # (Cout, HW)
        zs = jnp.dot(ws_ref[...].astype(_MXU_DTYPE),
                     x_ref[0].astype(_MXU_DTYPE),
                     preferred_element_type=jnp.float32)      # (Cout, HW)
        s = zs * scs_ref[...] + shs_ref[...]
        o_ref[0] = jnp.maximum(r + s, 0.0)

    # ------------------------- wrapper-side prep ----------------------------
    xf = x_nchw.astype(jnp.float32)
    # Tiny pad of x + free row-major reshapes (no whole-tensor transposes).
    x_pad = jnp.pad(xf, ((0, 0), (0, 0), (1, 1), (1, 1))).reshape(N, Cin, PAD)
    x_flat = xf.reshape(N, Cin, HW)

    # Weight packing: columns ordered (dy, dx, c) to match the tap ordering.
    w1m = jnp.transpose(w1, (0, 2, 3, 1)).reshape(Cout, 9 * Cin).astype(_MXU_DTYPE)
    w2m = jnp.transpose(w2, (0, 2, 3, 1)).reshape(Cout, 9 * Cout).astype(_MXU_DTYPE)
    wsm = ws[:, :, 0, 0].astype(_MXU_DTYPE)                   # (Cout, Cin)

    # Validity mask over the padded pitched layout (1 at interior positions).
    ii = jnp.arange(H + 2).reshape(-1, 1)
    jj = jnp.arange(W + 2).reshape(1, -1)
    mask = ((ii >= 1) & (ii <= H) & (jj >= 1) & (jj <= W)).astype(
        jnp.float32).reshape(1, PAD)

    cparams = pltpu.CompilerParams(
        dimension_semantics=("parallel",),          # megacore-shard on v7x
        vmem_limit_bytes=32 * 1024 * 1024)

    def bcast(a):                                   # whole-array broadcast
        return pl.BlockSpec(a.shape, lambda n: (0,) * a.ndim)

    xpad_spec = pl.BlockSpec((1, Cin, PAD), lambda n: (n, 0, 0))
    xflat_spec = pl.BlockSpec((1, Cin, HW), lambda n: (n, 0, 0))
    z1_spec = pl.BlockSpec((1, Cout, PAD), lambda n: (n, 0, 0))
    z2_spec = pl.BlockSpec((1, Cout, HW), lambda n: (n, 0, 0))
    stat_spec = pl.BlockSpec((1, Cout, 1), lambda n: (n, 0, 0))
    vec_spec = pl.BlockSpec((Cout, 1), lambda n: (0, 0))
    stat_shape = jax.ShapeDtypeStruct((N, Cout, 1), jnp.float32)

    # ---- Pass 1 -------------------------------------------------------------
    z1, s1s, s1q, sss, ssq = pl.pallas_call(
        conv1_kernel,
        grid=(N,),
        in_specs=[xpad_spec, bcast(w1m), bcast(wsm), bcast(mask)],
        out_specs=[z1_spec, stat_spec, stat_spec, stat_spec, stat_spec],
        out_shape=[jax.ShapeDtypeStruct((N, Cout, PAD), jnp.float32),
                   stat_shape, stat_shape, stat_shape, stat_shape],
        compiler_params=cparams,
        cost_estimate=pl.CostEstimate(
            flops=2 * N * Cout * (9 * Cin * P + Cin * PAD),
            transcendentals=0,
            bytes_accessed=4 * (x_pad.size + N * Cout * PAD
                                + w1m.size + wsm.size + mask.size)),
    )(x_pad, w1m, wsm, mask)

    sc1, sh1 = _bn_scale_shift(s1s, s1q, COUNT, g1, b1)
    scs, shs = _bn_scale_shift(sss, ssq, COUNT, gs, bs)

    # ---- Pass 2 -------------------------------------------------------------
    z2, s2s, s2q = pl.pallas_call(
        conv2_kernel,
        grid=(N,),
        in_specs=[z1_spec, vec_spec, vec_spec, bcast(w2m), bcast(mask)],
        out_specs=[z2_spec, stat_spec, stat_spec],
        out_shape=[jax.ShapeDtypeStruct((N, Cout, HW), jnp.float32),
                   stat_shape, stat_shape],
        compiler_params=cparams,
        cost_estimate=pl.CostEstimate(
            flops=2 * N * Cout * 9 * Cout * P,
            transcendentals=0,
            bytes_accessed=4 * (N * Cout * (PAD + HW) + w2m.size + mask.size)),
    )(z1, sc1, sh1, w2m, mask)

    sc2, sh2 = _bn_scale_shift(s2s, s2q, COUNT, g2, b2)

    # ---- Pass 3 -------------------------------------------------------------
    out = pl.pallas_call(
        bn_add_relu_kernel,
        grid=(N,),
        in_specs=[z2_spec, xflat_spec, bcast(wsm),
                  vec_spec, vec_spec, vec_spec, vec_spec],
        out_specs=z2_spec,
        out_shape=jax.ShapeDtypeStruct((N, Cout, HW), jnp.float32),
        compiler_params=cparams,
        cost_estimate=pl.CostEstimate(
            flops=2 * N * Cout * Cin * HW + 6 * N * Cout * HW,
            transcendentals=0,
            bytes_accessed=4 * (2 * N * Cout * HW + x_flat.size + wsm.size)),
    )(z2, x_flat, wsm, sc2, sh2, scs, shs)

    return out.reshape(N, Cout, H, W)     # free row-major reshape to NCHW


def _ref_forward(x, params):
    """Pure-JAX reference matching the PyTorch forward (training-mode BN)."""
    w1, g1, b1, w2, g2, b2, ws, gs, bs = params

    def conv(x, w, pad=1):
        return jax.lax.conv_general_dilated(
            x, w, (1, 1), ((pad, pad), (pad, pad)),
            dimension_numbers=('NCHW', 'OIHW', 'NCHW'))

    def bn(x, g, b):
        m = x.mean(axis=(0, 2, 3), keepdims=True)
        v = ((x - m) ** 2).mean(axis=(0, 2, 3), keepdims=True)
        return ((x - m) / jnp.sqrt(v + EPS) * g.reshape(1, -1, 1, 1)
                + b.reshape(1, -1, 1, 1))

    r = jax.nn.relu(bn(conv(x, w1), g1, b1))
    r = bn(conv(r, w2), g2, b2)
    s = bn(conv(x, ws, pad=0), gs, bs)
    return jax.nn.relu(r + s)


if __name__ == "__main__":
    N, Cin, H, W = 2, 4, 16, 16
    Cout = 8  # in_channels != out_channels -> projection shortcut path

    key = jax.random.PRNGKey(0)
    ks = jax.random.split(key, 10)

    x = jax.random.normal(ks[0], (N, Cin, H, W), jnp.float32)

    # Deterministic synthetic parameters (shapes from BasicBlock.__init__).
    w1 = 0.1 * jax.random.normal(ks[1], (Cout, Cin, 3, 3), jnp.float32)
    w2 = 0.1 * jax.random.normal(ks[2], (Cout, Cout, 3, 3), jnp.float32)
    ws = 0.1 * jax.random.normal(ks[3], (Cout, Cin, 1, 1), jnp.float32)
    g1 = 1.0 + 0.1 * jax.random.normal(ks[4], (Cout,), jnp.float32)
    b1 = 0.1 * jax.random.normal(ks[5], (Cout,), jnp.float32)
    g2 = 1.0 + 0.1 * jax.random.normal(ks[6], (Cout,), jnp.float32)
    b2 = 0.1 * jax.random.normal(ks[7], (Cout,), jnp.float32)
    gs = 1.0 + 0.1 * jax.random.normal(ks[8], (Cout,), jnp.float32)
    bs = 0.1 * jax.random.normal(ks[9], (Cout,), jnp.float32)

    params = (w1, g1, b1, w2, g2, b2, ws, gs, bs)

    out = jax.jit(basic_block_forward)(x, params)
    out = jax.block_until_ready(out)

    ref = _ref_forward(x, params)
    assert out.shape == (N, Cout, H, W), out.shape
    assert jnp.allclose(out, ref, atol=1e-3, rtol=1e-3), \
        float(jnp.max(jnp.abs(out - ref)))

    print("KERNEL_OK")
</pallas_src>

<mosaic_0001>
module attributes {stable_mosaic.version = 11 : i64} {
  func.func @conv1_kernel(%arg0: i32, %arg1: memref<1x4x324xf32, #tpu.memory_space<vmem>>, %arg2: memref<8x36xf32, #tpu.memory_space<vmem>>, %arg3: memref<8x4xf32, #tpu.memory_space<vmem>>, %arg4: memref<1x324xf32, #tpu.memory_space<vmem>>, %arg5: memref<1x8x324xf32, #tpu.memory_space<vmem>>, %arg6: memref<1x8x1xf32, #tpu.memory_space<vmem>>, %arg7: memref<1x8x1xf32, #tpu.memory_space<vmem>>, %arg8: memref<1x8x1xf32, #tpu.memory_space<vmem>>, %arg9: memref<1x8x1xf32, #tpu.memory_space<vmem>>) attributes {dimension_semantics = [#tpu.dimension_semantics<parallel>], iteration_bounds = array<i64: 2>, scalar_prefetch = 0 : i64, scratch_operands = 0 : i64, tpu.core_type = #tpu.core_type<tc>, window_params = [{transform_indices = @transform_0, window_bounds = array<i64: 1, 4, 324>}, {pipeline_mode = #tpu.pipeline_mode<synchronous>, transform_indices = @transform_1, window_bounds = array<i64: 8, 36>}, {pipeline_mode = #tpu.pipeline_mode<synchronous>, transform_indices = @transform_2, window_bounds = array<i64: 8, 4>}, {pipeline_mode = #tpu.pipeline_mode<synchronous>, transform_indices = @transform_3, window_bounds = array<i64: 1, 324>}, {transform_indices = @transform_4, window_bounds = array<i64: 1, 8, 324>}, {transform_indices = @transform_5, window_bounds = array<i64: 1, 8, 1>}, {transform_indices = @transform_6, window_bounds = array<i64: 1, 8, 1>}, {transform_indices = @transform_7, window_bounds = array<i64: 1, 8, 1>}, {transform_indices = @transform_8, window_bounds = array<i64: 1, 8, 1>}]} {
    %c0 = arith.constant 0 : index
    %c0_0 = arith.constant 0 : index
    %c0_1 = arith.constant 0 : index
    %0 = vector.load %arg1[%c0, %c0_0, %c0_1] : memref<1x4x324xf32, #tpu.memory_space<vmem>>, vector<1x4x324xf32>
    %1 = vector.shape_cast %0 : vector<1x4x324xf32> to vector<4x324xf32>
    %c0_2 = arith.constant 0 : index
    %c0_3 = arith.constant 0 : index
    %2 = vector.load %arg2[%c0_2, %c0_3] : memref<8x36xf32, #tpu.memory_space<vmem>>, vector<8x36xf32>
    %3 = vector.extract_strided_slice %1 {offsets = [0, 0], sizes = [4, 286], strides = [1, 1]} : vector<4x324xf32> to vector<4x286xf32>
    %4 = vector.extract_strided_slice %1 {offsets = [0, 1], sizes = [4, 286], strides = [1, 1]} : vector<4x324xf32> to vector<4x286xf32>
    %5 = vector.extract_strided_slice %1 {offsets = [0, 2], sizes = [4, 286], strides = [1, 1]} : vector<4x324xf32> to vector<4x286xf32>
    %6 = vector.extract_strided_slice %1 {offsets = [0, 18], sizes = [4, 286], strides = [1, 1]} : vector<4x324xf32> to vector<4x286xf32>
    %7 = vector.extract_strided_slice %1 {offsets = [0, 19], sizes = [4, 286], strides = [1, 1]} : vector<4x324xf32> to vector<4x286xf32>
    %8 = vector.extract_strided_slice %1 {offsets = [0, 20], sizes = [4, 286], strides = [1, 1]} : vector<4x324xf32> to vector<4x286xf32>
    %9 = vector.extract_strided_slice %1 {offsets = [0, 36], sizes = [4, 286], strides = [1, 1]} : vector<4x324xf32> to vector<4x286xf32>
    %10 = vector.extract_strided_slice %1 {offsets = [0, 37], sizes = [4, 286], strides = [1, 1]} : vector<4x324xf32> to vector<4x286xf32>
    %11 = vector.extract_strided_slice %1 {offsets = [0, 38], sizes = [4, 286], strides = [1, 1]} : vector<4x324xf32> to vector<4x286xf32>
    %12 = tpu.concatenate %3, %4, %5, %6, %7, %8, %9, %10, %11 in 0 : vector<4x286xf32>, vector<4x286xf32>, vector<4x286xf32>, vector<4x286xf32>, vector<4x286xf32>, vector<4x286xf32>, vector<4x286xf32>, vector<4x286xf32>, vector<4x286xf32> -> vector<36x286xf32>
    %cst = arith.constant dense<0.000000e+00> : vector<8x286xf32>
    %13 = tpu.matmul %2, %12, %cst {dimension_numbers = #tpu.dot_dimension_numbers<[1], [0], [0], [1], [0, 0, 1, 1], [], []>} : vector<8x36xf32>, vector<36x286xf32>, vector<8x286xf32> -> vector<8x286xf32>
    %cst_4 = arith.constant 0.000000e+00 : f32
    %14 = vector.broadcast %cst_4 : f32 to vector<8x19xf32>
    %15 = tpu.concatenate %14, %13, %14 in 1 : vector<8x19xf32>, vector<8x286xf32>, vector<8x19xf32> -> vector<8x324xf32>
    %c0_5 = arith.constant 0 : index
    %c0_6 = arith.constant 0 : index
    %16 = vector.load %arg4[%c0_5, %c0_6] : memref<1x324xf32, #tpu.memory_space<vmem>>, vector<1x324xf32>
    %17 = vector.broadcast %16 : vector<1x324xf32> to vector<8x324xf32>
    %18 = arith.mulf %15, %17 : vector<8x324xf32>
    %c0_7 = arith.constant 0 : index
    %c0_8 = arith.constant 0 : index
    %c0_9 = arith.constant 0 : index
    %19 = vector.load %arg5[%c0_7, %c0_8, %c0_9] : memref<1x8x324xf32, #tpu.memory_space<vmem>>, vector<1x8x324xf32>
    %20 = vector.shape_cast %19 : vector<1x8x324xf32> to vector<8x324xf32>
    %21 = vector.shape_cast %18 : vector<8x324xf32> to vector<1x8x324xf32>
    tpu.vector_store %arg5[%c0_7, %c0_8, %c0_9], %21 {strides = array<i32>} : memref<1x8x324xf32, #tpu.memory_space<vmem>>, vector<1x8x324xf32>,
    %cst_10 = arith.constant dense<0.000000e+00> : vector<8xf32>
    %22 = vector.multi_reduction <add>, %18, %cst_10 [1] : vector<8x324xf32> to vector<8xf32>
    %23 = vector.shape_cast %22 : vector<8xf32> to vector<8x1xf32>
    %c0_11 = arith.constant 0 : index
    %c0_12 = arith.constant 0 : index
    %c0_13 = arith.constant 0 : index
    %24 = vector.load %arg6[%c0_11, %c0_12, %c0_13] : memref<1x8x1xf32, #tpu.memory_space<vmem>>, vector<1x8x1xf32>
    %25 = vector.shape_cast %24 : vector<1x8x1xf32> to vector<8x1xf32>
    %26 = vector.shape_cast %23 : vector<8x1xf32> to vector<1x8x1xf32>
    tpu.vector_store %arg6[%c0_11, %c0_12, %c0_13], %26 {strides = array<i32>} : memref<1x8x1xf32, #tpu.memory_space<vmem>>, vector<1x8x1xf32>,
    %27 = arith.mulf %18, %18 : vector<8x324xf32>
    %cst_14 = arith.constant dense<0.000000e+00> : vector<8xf32>
    %28 = vector.multi_reduction <add>, %27, %cst_14 [1] : vector<8x324xf32> to vector<8xf32>
    %29 = vector.shape_cast %28 : vector<8xf32> to vector<8x1xf32>
    %c0_15 = arith.constant 0 : index
    %c0_16 = arith.constant 0 : index
    %c0_17 = arith.constant 0 : index
    %30 = vector.load %arg7[%c0_15, %c0_16, %c0_17] : memref<1x8x1xf32, #tpu.memory_space<vmem>>, vector<1x8x1xf32>
    %31 = vector.shape_cast %30 : vector<1x8x1xf32> to vector<8x1xf32>
    %32 = vector.shape_cast %29 : vector<8x1xf32> to vector<1x8x1xf32>
    tpu.vector_store %arg7[%c0_15, %c0_16, %c0_17], %32 {strides = array<i32>} : memref<1x8x1xf32, #tpu.memory_space<vmem>>, vector<1x8x1xf32>,
    %c0_18 = arith.constant 0 : index
    %c0_19 = arith.constant 0 : index
    %33 = vector.load %arg3[%c0_18, %c0_19] : memref<8x4xf32, #tpu.memory_space<vmem>>, vector<8x4xf32>
    %cst_20 = arith.constant dense<0.000000e+00> : vector<8x324xf32>
    %34 = tpu.matmul %33, %1, %cst_20 {dimension_numbers = #tpu.dot_dimension_numbers<[1], [0], [0], [1], [0, 0, 1, 1], [], []>} : vector<8x4xf32>, vector<4x324xf32>, vector<8x324xf32> -> vector<8x324xf32>
    %cst_21 = arith.constant dense<0.000000e+00> : vector<8xf32>
    %35 = vector.multi_reduction <add>, %34, %cst_21 [1] : vector<8x324xf32> to vector<8xf32>
    %36 = vector.shape_cast %35 : vector<8xf32> to vector<8x1xf32>
    %c0_22 = arith.constant 0 : index
    %c0_23 = arith.constant 0 : index
    %c0_24 = arith.constant 0 : index
    %37 = vector.load %arg8[%c0_22, %c0_23, %c0_24] : memref<1x8x1xf32, #tpu.memory_space<vmem>>, vector<1x8x1xf32>
    %38 = vector.shape_cast %37 : vector<1x8x1xf32> to vector<8x1xf32>
    %39 = vector.shape_cast %36 : vector<8x1xf32> to vector<1x8x1xf32>
    tpu.vector_store %arg8[%c0_22, %c0_23, %c0_24], %39 {strides = array<i32>} : memref<1x8x1xf32, #tpu.memory_space<vmem>>, vector<1x8x1xf32>,
    %40 = arith.mulf %34, %34 : vector<8x324xf32>
    %cst_25 = arith.constant dense<0.000000e+00> : vector<8xf32>
    %41 = vector.multi_reduction <add>, %40, %cst_25 [1] : vector<8x324xf32> to vector<8xf32>
    %42 = vector.shape_cast %41 : vector<8xf32> to vector<8x1xf32>
    %c0_26 = arith.constant 0 : index
    %c0_27 = arith.constant 0 : index
    %c0_28 = arith.constant 0 : index
    %43 = vector.load %arg9[%c0_26, %c0_27, %c0_28] : memref<1x8x1xf32, #tpu.memory_space<vmem>>, vector<1x8x1xf32>
    %44 = vector.shape_cast %43 : vector<1x8x1xf32> to vector<8x1xf32>
    %45 = vector.shape_cast %42 : vector<8x1xf32> to vector<1x8x1xf32>
    tpu.vector_store %arg9[%c0_26, %c0_27, %c0_28], %45 {strides = array<i32>} : memref<1x8x1xf32, #tpu.memory_space<vmem>>, vector<1x8x1xf32>,
    return
  }
  func.func @transform_0(%arg0: i32) -> (i32, i32, i32) {
    %c0_i32 = arith.constant 0 : i32
    %c0_i32_0 = arith.constant 0 : i32
    %c0_i32_1 = arith.constant 0 : i32
    return %arg0, %c0_i32, %c0_i32_0 : i32, i32, i32
  }
  func.func @transform_1(%arg0: i32) -> (i32, i32) {
    %c0_i32 = arith.constant 0 : i32
    %c0_i32_0 = arith.constant 0 : i32
    %c0_i32_1 = arith.constant 0 : i32
    return %c0_i32, %c0_i32_0 : i32, i32
  }
  func.func @transform_2(%arg0: i32) -> (i32, i32) {
    %c0_i32 = arith.constant 0 : i32
    %c0_i32_0 = arith.constant 0 : i32
    %c0_i32_1 = arith.constant 0 : i32
    return %c0_i32, %c0_i32_0 : i32, i32
  }
  func.func @transform_3(%arg0: i32) -> (i32, i32) {
    %c0_i32 = arith.constant 0 : i32
    %c0_i32_0 = arith.constant 0 : i32
    %c0_i32_1 = arith.constant 0 : i32
    return %c0_i32, %c0_i32_0 : i32, i32
  }
  func.func @transform_4(%arg0: i32) -> (i32, i32, i32) {
    %c0_i32 = arith.constant 0 : i32
    %c0_i32_0 = arith.constant 0 : i32
    %c0_i32_1 = arith.constant 0 : i32
    return %arg0, %c0_i32, %c0_i32_0 : i32, i32, i32
  }
  func.func @transform_5(%arg0: i32) -> (i32, i32, i32) {
    %c0_i32 = arith.constant 0 : i32
    %c0_i32_0 = arith.constant 0 : i32
    %c0_i32_1 = arith.constant 0 : i32
    return %arg0, %c0_i32, %c0_i32_0 : i32, i32, i32
  }
  func.func @transform_6(%arg0: i32) -> (i32, i32, i32) {
    %c0_i32 = arith.constant 0 : i32
    %c0_i32_0 = arith.constant 0 : i32
    %c0_i32_1 = arith.constant 0 : i32
    return %arg0, %c0_i32, %c0_i32_0 : i32, i32, i32
  }
  func.func @transform_7(%arg0: i32) -> (i32, i32, i32) {
    %c0_i32 = arith.constant 0 : i32
    %c0_i32_0 = arith.constant 0 : i32
    %c0_i32_1 = arith.constant 0 : i32
    return %arg0, %c0_i32, %c0_i32_0 : i32, i32, i32
  }
  func.func @transform_8(%arg0: i32) -> (i32, i32, i32) {
    %c0_i32 = arith.constant 0 : i32
    %c0_i32_0 = arith.constant 0 : i32
    %c0_i32_1 = arith.constant 0 : i32
    return %arg0, %c0_i32, %c0_i32_0 : i32, i32, i32
  }
}

module attributes {stable_mosaic.version = 11 : i64} {
  func.func @bn_add_relu_kernel(%arg0: i32, %arg1: memref<1x8x256xf32, #tpu.memory_space<vmem>>, %arg2: memref<1x4x256xf32, #tpu.memory_space<vmem>>, %arg3: memref<8x4xf32, #tpu.memory_space<vmem>>, %arg4: memref<8x1xf32, #tpu.memory_space<vmem>>, %arg5: memref<8x1xf32, #tpu.memory_space<vmem>>, %arg6: memref<8x1xf32, #tpu.memory_space<vmem>>, %arg7: memref<8x1xf32, #tpu.memory_space<vmem>>, %arg8: memref<1x8x256xf32, #tpu.memory_space<vmem>>) attributes {dimension_semantics = [#tpu.dimension_semantics<parallel>], iteration_bounds = array<i64: 2>, scalar_prefetch = 0 : i64, scratch_operands = 0 : i64, tpu.core_type = #tpu.core_type<tc>, window_params = [{transform_indices = @transform_0, window_bounds = array<i64: 1, 8, 256>}, {transform_indices = @transform_1, window_bounds = array<i64: 1, 4, 256>}, {pipeline_mode = #tpu.pipeline_mode<synchronous>, transform_indices = @transform_2, window_bounds = array<i64: 8, 4>}, {pipeline_mode = #tpu.pipeline_mode<synchronous>, transform_indices = @transform_3, window_bounds = array<i64: 8, 1>}, {pipeline_mode = #tpu.pipeline_mode<synchronous>, transform_indices = @transform_4, window_bounds = array<i64: 8, 1>}, {pipeline_mode = #tpu.pipeline_mode<synchronous>, transform_indices = @transform_5, window_bounds = array<i64: 8, 1>}, {pipeline_mode = #tpu.pipeline_mode<synchronous>, transform_indices = @transform_6, window_bounds = array<i64: 8, 1>}, {transform_indices = @transform_7, window_bounds = array<i64: 1, 8, 256>}]} {
    %c0 = arith.constant 0 : index
    %c0_0 = arith.constant 0 : index
    %c0_1 = arith.constant 0 : index
    %0 = vector.load %arg1[%c0, %c0_0, %c0_1] : memref<1x8x256xf32, #tpu.memory_space<vmem>>, vector<1x8x256xf32>
    %1 = vector.shape_cast %0 : vector<1x8x256xf32> to vector<8x256xf32>
    %c0_2 = arith.constant 0 : index
    %c0_3 = arith.constant 0 : index
    %2 = vector.load %arg4[%c0_2, %c0_3] : memref<8x1xf32, #tpu.memory_space<vmem>>, vector<8x1xf32>
    %3 = vector.broadcast %2 : vector<8x1xf32> to vector<8x256xf32>
    %4 = arith.mulf %1, %3 : vector<8x256xf32>
    %c0_4 = arith.constant 0 : index
    %c0_5 = arith.constant 0 : index
    %5 = vector.load %arg5[%c0_4, %c0_5] : memref<8x1xf32, #tpu.memory_space<vmem>>, vector<8x1xf32>
    %6 = vector.broadcast %5 : vector<8x1xf32> to vector<8x256xf32>
    %7 = arith.addf %4, %6 : vector<8x256xf32>
    %c0_6 = arith.constant 0 : index
    %c0_7 = arith.constant 0 : index
    %8 = vector.load %arg3[%c0_6, %c0_7] : memref<8x4xf32, #tpu.memory_space<vmem>>, vector<8x4xf32>
    %c0_8 = arith.constant 0 : index
    %c0_9 = arith.constant 0 : index
    %c0_10 = arith.constant 0 : index
    %9 = vector.load %arg2[%c0_8, %c0_9, %c0_10] : memref<1x4x256xf32, #tpu.memory_space<vmem>>, vector<1x4x256xf32>
    %10 = vector.shape_cast %9 : vector<1x4x256xf32> to vector<4x256xf32>
    %cst = arith.constant dense<0.000000e+00> : vector<8x256xf32>
    %11 = tpu.matmul %8, %10, %cst {dimension_numbers = #tpu.dot_dimension_numbers<[1], [0], [0], [1], [0, 0, 1, 1], [], []>} : vector<8x4xf32>, vector<4x256xf32>, vector<8x256xf32> -> vector<8x256xf32>
    %c0_11 = arith.constant 0 : index
    %c0_12 = arith.constant 0 : index
    %12 = vector.load %arg6[%c0_11, %c0_12] : memref<8x1xf32, #tpu.memory_space<vmem>>, vector<8x1xf32>
    %13 = vector.broadcast %12 : vector<8x1xf32> to vector<8x256xf32>
    %14 = arith.mulf %11, %13 : vector<8x256xf32>
    %c0_13 = arith.constant 0 : index
    %c0_14 = arith.constant 0 : index
    %15 = vector.load %arg7[%c0_13, %c0_14] : memref<8x1xf32, #tpu.memory_space<vmem>>, vector<8x1xf32>
    %16 = vector.broadcast %15 : vector<8x1xf32> to vector<8x256xf32>
    %17 = arith.addf %14, %16 : vector<8x256xf32>
    %18 = arith.addf %7, %17 : vector<8x256xf32>
    %cst_15 = arith.constant 0.000000e+00 : f32
    %19 = vector.broadcast %cst_15 : f32 to vector<8x256xf32>
    %20 = arith.maximumf %18, %19 : vector<8x256xf32>
    %c0_16 = arith.constant 0 : index
    %c0_17 = arith.constant 0 : index
    %c0_18 = arith.constant 0 : index
    %21 = vector.load %arg8[%c0_16, %c0_17, %c0_18] : memref<1x8x256xf32, #tpu.memory_space<vmem>>, vector<1x8x256xf32>
    %22 = vector.shape_cast %21 : vector<1x8x256xf32> to vector<8x256xf32>
    %23 = vector.shape_cast %20 : vector<8x256xf32> to vector<1x8x256xf32>
    tpu.vector_store %arg8[%c0_16, %c0_17, %c0_18], %23 {strides = array<i32>} : memref<1x8x256xf32, #tpu.memory_space<vmem>>, vector<1x8x256xf32>,
    return
  }
  func.func @transform_0(%arg0: i32) -> (i32, i32, i32) {
    %c0_i32 = arith.constant 0 : i32
    %c0_i32_0 = arith.constant 0 : i32
    %c0_i32_1 = arith.constant 0 : i32
    return %arg0, %c0_i32, %c0_i32_0 : i32, i32, i32
  }
  func.func @transform_1(%arg0: i32) -> (i32, i32, i32) {
    %c0_i32 = arith.constant 0 : i32
    %c0_i32_0 = arith.constant 0 : i32
    %c0_i32_1 = arith.constant 0 : i32
    return %arg0, %c0_i32, %c0_i32_0 : i32, i32, i32
  }
  func.func @transform_2(%arg0: i32) -> (i32, i32) {
    %c0_i32 = arith.constant 0 : i32
    %c0_i32_0 = arith.constant 0 : i32
    %c0_i32_1 = arith.constant 0 : i32
    return %c0_i32, %c0_i32_0 : i32, i32
  }
  func.func @transform_3(%arg0: i32) -> (i32, i32) {
    %c0_i32 = arith.constant 0 : i32
    %c0_i32_0 = arith.constant 0 : i32
    %c0_i32_1 = arith.constant 0 : i32
    return %c0_i32, %c0_i32_0 : i32, i32
  }
  func.func @transform_4(%arg0: i32) -> (i32, i32) {
    %c0_i32 = arith.constant 0 : i32
    %c0_i32_0 = arith.constant 0 : i32
    %c0_i32_1 = arith.constant 0 : i32
    return %c0_i32, %c0_i32_0 : i32, i32
  }
  func.func @transform_5(%arg0: i32) -> (i32, i32) {
    %c0_i32 = arith.constant 0 : i32
    %c0_i32_0 = arith.constant 0 : i32
    %c0_i32_1 = arith.constant 0 : i32
    return %c0_i32, %c0_i32_0 : i32, i32
  }
  func.func @transform_6(%arg0: i32) -> (i32, i32) {
    %c0_i32 = arith.constant 0 : i32
    %c0_i32_0 = arith.constant 0 : i32
    %c0_i32_1 = arith.constant 0 : i32
    return %c0_i32, %c0_i32_0 : i32, i32
  }
  func.func @transform_7(%arg0: i32) -> (i32, i32, i32) {
    %c0_i32 = arith.constant 0 : i32
    %c0_i32_0 = arith.constant 0 : i32
    %c0_i32_1 = arith.constant 0 : i32
    return %arg0, %c0_i32, %c0_i32_0 : i32, i32, i32
  }
}

module attributes {stable_mosaic.version = 11 : i64} {
  func.func @conv2_kernel(%arg0: i32, %arg1: memref<1x8x324xf32, #tpu.memory_space<vmem>>, %arg2: memref<8x1xf32, #tpu.memory_space<vmem>>, %arg3: memref<8x1xf32, #tpu.memory_space<vmem>>, %arg4: memref<8x72xf32, #tpu.memory_space<vmem>>, %arg5: memref<1x324xf32, #tpu.memory_space<vmem>>, %arg6: memref<1x8x256xf32, #tpu.memory_space<vmem>>, %arg7: memref<1x8x1xf32, #tpu.memory_space<vmem>>, %arg8: memref<1x8x1xf32, #tpu.memory_space<vmem>>) attributes {dimension_semantics = [#tpu.dimension_semantics<parallel>], iteration_bounds = array<i64: 2>, scalar_prefetch = 0 : i64, scratch_operands = 0 : i64, tpu.core_type = #tpu.core_type<tc>, window_params = [{transform_indices = @transform_0, window_bounds = array<i64: 1, 8, 324>}, {pipeline_mode = #tpu.pipeline_mode<synchronous>, transform_indices = @transform_1, window_bounds = array<i64: 8, 1>}, {pipeline_mode = #tpu.pipeline_mode<synchronous>, transform_indices = @transform_2, window_bounds = array<i64: 8, 1>}, {pipeline_mode = #tpu.pipeline_mode<synchronous>, transform_indices = @transform_3, window_bounds = array<i64: 8, 72>}, {pipeline_mode = #tpu.pipeline_mode<synchronous>, transform_indices = @transform_4, window_bounds = array<i64: 1, 324>}, {transform_indices = @transform_5, window_bounds = array<i64: 1, 8, 256>}, {transform_indices = @transform_6, window_bounds = array<i64: 1, 8, 1>}, {transform_indices = @transform_7, window_bounds = array<i64: 1, 8, 1>}]} {
    %c0 = arith.constant 0 : index
    %c0_0 = arith.constant 0 : index
    %c0_1 = arith.constant 0 : index
    %0 = vector.load %arg1[%c0, %c0_0, %c0_1] : memref<1x8x324xf32, #tpu.memory_space<vmem>>, vector<1x8x324xf32>
    %1 = vector.shape_cast %0 : vector<1x8x324xf32> to vector<8x324xf32>
    %c0_2 = arith.constant 0 : index
    %c0_3 = arith.constant 0 : index
    %2 = vector.load %arg2[%c0_2, %c0_3] : memref<8x1xf32, #tpu.memory_space<vmem>>, vector<8x1xf32>
    %3 = vector.broadcast %2 : vector<8x1xf32> to vector<8x324xf32>
    %4 = arith.mulf %1, %3 : vector<8x324xf32>
    %c0_4 = arith.constant 0 : index
    %c0_5 = arith.constant 0 : index
    %5 = vector.load %arg3[%c0_4, %c0_5] : memref<8x1xf32, #tpu.memory_space<vmem>>, vector<8x1xf32>
    %6 = vector.broadcast %5 : vector<8x1xf32> to vector<8x324xf32>
    %7 = arith.addf %4, %6 : vector<8x324xf32>
    %cst = arith.constant 0.000000e+00 : f32
    %8 = vector.broadcast %cst : f32 to vector<8x324xf32>
    %9 = arith.maximumf %7, %8 : vector<8x324xf32>
    %c0_6 = arith.constant 0 : index
    %c0_7 = arith.constant 0 : index
    %10 = vector.load %arg5[%c0_6, %c0_7] : memref<1x324xf32, #tpu.memory_space<vmem>>, vector<1x324xf32>
    %11 = vector.broadcast %10 : vector<1x324xf32> to vector<8x324xf32>
    %12 = arith.mulf %9, %11 : vector<8x324xf32>
    %c0_8 = arith.constant 0 : index
    %c0_9 = arith.constant 0 : index
    %13 = vector.load %arg4[%c0_8, %c0_9] : memref<8x72xf32, #tpu.memory_space<vmem>>, vector<8x72xf32>
    %14 = vector.extract_strided_slice %12 {offsets = [0, 0], sizes = [8, 286], strides = [1, 1]} : vector<8x324xf32> to vector<8x286xf32>
    %15 = vector.extract_strided_slice %12 {offsets = [0, 1], sizes = [8, 286], strides = [1, 1]} : vector<8x324xf32> to vector<8x286xf32>
    %16 = vector.extract_strided_slice %12 {offsets = [0, 2], sizes = [8, 286], strides = [1, 1]} : vector<8x324xf32> to vector<8x286xf32>
    %17 = vector.extract_strided_slice %12 {offsets = [0, 18], sizes = [8, 286], strides = [1, 1]} : vector<8x324xf32> to vector<8x286xf32>
    %18 = vector.extract_strided_slice %12 {offsets = [0, 19], sizes = [8, 286], strides = [1, 1]} : vector<8x324xf32> to vector<8x286xf32>
    %19 = vector.extract_strided_slice %12 {offsets = [0, 20], sizes = [8, 286], strides = [1, 1]} : vector<8x324xf32> to vector<8x286xf32>
    %20 = vector.extract_strided_slice %12 {offsets = [0, 36], sizes = [8, 286], strides = [1, 1]} : vector<8x324xf32> to vector<8x286xf32>
    %21 = vector.extract_strided_slice %12 {offsets = [0, 37], sizes = [8, 286], strides = [1, 1]} : vector<8x324xf32> to vector<8x286xf32>
    %22 = vector.extract_strided_slice %12 {offsets = [0, 38], sizes = [8, 286], strides = [1, 1]} : vector<8x324xf32> to vector<8x286xf32>
    %23 = tpu.concatenate %14, %15, %16, %17, %18, %19, %20, %21, %22 in 0 : vector<8x286xf32>, vector<8x286xf32>, vector<8x286xf32>, vector<8x286xf32>, vector<8x286xf32>, vector<8x286xf32>, vector<8x286xf32>, vector<8x286xf32>, vector<8x286xf32> -> vector<72x286xf32>
    %cst_10 = arith.constant dense<0.000000e+00> : vector<8x286xf32>
    %24 = tpu.matmul %13, %23, %cst_10 {dimension_numbers = #tpu.dot_dimension_numbers<[1], [0], [0], [1], [0, 0, 1, 1], [], []>} : vector<8x72xf32>, vector<72x286xf32>, vector<8x286xf32> -> vector<8x286xf32>
    %25 = vector.extract_strided_slice %24 {offsets = [0, 0], sizes = [8, 16], strides = [1, 1]} : vector<8x286xf32> to vector<8x16xf32>
    %26 = vector.extract_strided_slice %24 {offsets = [0, 18], sizes = [8, 16], strides = [1, 1]} : vector<8x286xf32> to vector<8x16xf32>
    %27 = vector.extract_strided_slice %24 {offsets = [0, 36], sizes = [8, 16], strides = [1, 1]} : vector<8x286xf32> to vector<8x16xf32>
    %28 = vector.extract_strided_slice %24 {offsets = [0, 54], sizes = [8, 16], strides = [1, 1]} : vector<8x286xf32> to vector<8x16xf32>
    %29 = vector.extract_strided_slice %24 {offsets = [0, 72], sizes = [8, 16], strides = [1, 1]} : vector<8x286xf32> to vector<8x16xf32>
    %30 = vector.extract_strided_slice %24 {offsets = [0, 90], sizes = [8, 16], strides = [1, 1]} : vector<8x286xf32> to vector<8x16xf32>
    %31 = vector.extract_strided_slice %24 {offsets = [0, 108], sizes = [8, 16], strides = [1, 1]} : vector<8x286xf32> to vector<8x16xf32>
    %32 = vector.extract_strided_slice %24 {offsets = [0, 126], sizes = [8, 16], strides = [1, 1]} : vector<8x286xf32> to vector<8x16xf32>
    %33 = vector.extract_strided_slice %24 {offsets = [0, 144], sizes = [8, 16], strides = [1, 1]} : vector<8x286xf32> to vector<8x16xf32>
    %34 = vector.extract_strided_slice %24 {offsets = [0, 162], sizes = [8, 16], strides = [1, 1]} : vector<8x286xf32> to vector<8x16xf32>
    %35 = vector.extract_strided_slice %24 {offsets = [0, 180], sizes = [8, 16], strides = [1, 1]} : vector<8x286xf32> to vector<8x16xf32>
    %36 = vector.extract_strided_slice %24 {offsets = [0, 198], sizes = [8, 16], strides = [1, 1]} : vector<8x286xf32> to vector<8x16xf32>
    %37 = vector.extract_strided_slice %24 {offsets = [0, 216], sizes = [8, 16], strides = [1, 1]} : vector<8x286xf32> to vector<8x16xf32>
    %38 = vector.extract_strided_slice %24 {offsets = [0, 234], sizes = [8, 16], strides = [1, 1]} : vector<8x286xf32> to vector<8x16xf32>
    %39 = vector.extract_strided_slice %24 {offsets = [0, 252], sizes = [8, 16], strides = [1, 1]} : vector<8x286xf32> to vector<8x16xf32>
    %40 = vector.extract_strided_slice %24 {offsets = [0, 270], sizes = [8, 16], strides = [1, 1]} : vector<8x286xf32> to vector<8x16xf32>
    %41 = tpu.concatenate %25, %26, %27, %28, %29, %30, %31, %32, %33, %34, %35, %36, %37, %38, %39, %40 in 1 : vector<8x16xf32>, vector<8x16xf32>, vector<8x16xf32>, vector<8x16xf32>, vector<8x16xf32>, vector<8x16xf32>, vector<8x16xf32>, vector<8x16xf32>, vector<8x16xf32>, vector<8x16xf32>, vector<8x16xf32>, vector<8x16xf32>, vector<8x16xf32>, vector<8x16xf32>, vector<8x16xf32>, vector<8x16xf32> -> vector<8x256xf32>
    %c0_11 = arith.constant 0 : index
    %c0_12 = arith.constant 0 : index
    %c0_13 = arith.constant 0 : index
    %42 = vector.load %arg6[%c0_11, %c0_12, %c0_13] : memref<1x8x256xf32, #tpu.memory_space<vmem>>, vector<1x8x256xf32>
    %43 = vector.shape_cast %42 : vector<1x8x256xf32> to vector<8x256xf32>
    %44 = vector.shape_cast %41 : vector<8x256xf32> to vector<1x8x256xf32>
    tpu.vector_store %arg6[%c0_11, %c0_12, %c0_13], %44 {strides = array<i32>} : memref<1x8x256xf32, #tpu.memory_space<vmem>>, vector<1x8x256xf32>,
    %cst_14 = arith.constant dense<0.000000e+00> : vector<8xf32>
    %45 = vector.multi_reduction <add>, %41, %cst_14 [1] : vector<8x256xf32> to vector<8xf32>
    %46 = vector.shape_cast %45 : vector<8xf32> to vector<8x1xf32>
    %c0_15 = arith.constant 0 : index
    %c0_16 = arith.constant 0 : index
    %c0_17 = arith.constant 0 : index
    %47 = vector.load %arg7[%c0_15, %c0_16, %c0_17] : memref<1x8x1xf32, #tpu.memory_space<vmem>>, vector<1x8x1xf32>
    %48 = vector.shape_cast %47 : vector<1x8x1xf32> to vector<8x1xf32>
    %49 = vector.shape_cast %46 : vector<8x1xf32> to vector<1x8x1xf32>
    tpu.vector_store %arg7[%c0_15, %c0_16, %c0_17], %49 {strides = array<i32>} : memref<1x8x1xf32, #tpu.memory_space<vmem>>, vector<1x8x1xf32>,
    %50 = arith.mulf %41, %41 : vector<8x256xf32>
    %cst_18 = arith.constant dense<0.000000e+00> : vector<8xf32>
    %51 = vector.multi_reduction <add>, %50, %cst_18 [1] : vector<8x256xf32> to vector<8xf32>
    %52 = vector.shape_cast %51 : vector<8xf32> to vector<8x1xf32>
    %c0_19 = arith.constant 0 : index
    %c0_20 = arith.constant 0 : index
    %c0_21 = arith.constant 0 : index
    %53 = vector.load %arg8[%c0_19, %c0_20, %c0_21] : memref<1x8x1xf32, #tpu.memory_space<vmem>>, vector<1x8x1xf32>
    %54 = vector.shape_cast %53 : vector<1x8x1xf32> to vector<8x1xf32>
    %55 = vector.shape_cast %52 : vector<8x1xf32> to vector<1x8x1xf32>
    tpu.vector_store %arg8[%c0_19, %c0_20, %c0_21], %55 {strides = array<i32>} : memref<1x8x1xf32, #tpu.memory_space<vmem>>, vector<1x8x1xf32>,
    return
  }
  func.func @transform_0(%arg0: i32) -> (i32, i32, i32) {
    %c0_i32 = arith.constant 0 : i32
    %c0_i32_0 = arith.constant 0 : i32
    %c0_i32_1 = arith.constant 0 : i32
    return %arg0, %c0_i32, %c0_i32_0 : i32, i32, i32
  }
  func.func @transform_1(%arg0: i32) -> (i32, i32) {
    %c0_i32 = arith.constant 0 : i32
    %c0_i32_0 = arith.constant 0 : i32
    %c0_i32_1 = arith.constant 0 : i32
    return %c0_i32, %c0_i32_0 : i32, i32
  }
  func.func @transform_2(%arg0: i32) -> (i32, i32) {
    %c0_i32 = arith.constant 0 : i32
    %c0_i32_0 = arith.constant 0 : i32
    %c0_i32_1 = arith.constant 0 : i32
    return %c0_i32, %c0_i32_0 : i32, i32
  }
  func.func @transform_3(%arg0: i32) -> (i32, i32) {
    %c0_i32 = arith.constant 0 : i32
    %c0_i32_0 = arith.constant 0 : i32
    %c0_i32_1 = arith.constant 0 : i32
    return %c0_i32, %c0_i32_0 : i32, i32
  }
  func.func @transform_4(%arg0: i32) -> (i32, i32) {
    %c0_i32 = arith.constant 0 : i32
    %c0_i32_0 = arith.constant 0 : i32
    %c0_i32_1 = arith.constant 0 : i32
    return %c0_i32, %c0_i32_0 : i32, i32
  }
  func.func @transform_5(%arg0: i32) -> (i32, i32, i32) {
    %c0_i32 = arith.constant 0 : i32
    %c0_i32_0 = arith.constant 0 : i32
    %c0_i32_1 = arith.constant 0 : i32
    return %arg0, %c0_i32, %c0_i32_0 : i32, i32, i32
  }
  func.func @transform_6(%arg0: i32) -> (i32, i32, i32) {
    %c0_i32 = arith.constant 0 : i32
    %c0_i32_0 = arith.constant 0 : i32
    %c0_i32_1 = arith.constant 0 : i32
    return %arg0, %c0_i32, %c0_i32_0 : i32, i32, i32
  }
  func.func @transform_7(%arg0: i32) -> (i32, i32, i32) {
    %c0_i32 = arith.constant 0 : i32
    %c0_i32_0 = arith.constant 0 : i32
    %c0_i32_1 = arith.constant 0 : i32
    return %arg0, %c0_i32, %c0_i32_0 : i32, i32, i32
  }
}

</mosaic_0001>

<llo_original>
// kernel: basic_block_forward.5
$region0: #{basic_block_forward.5}
  #allocation0 [shape = 'u32[]', space=smem, size = 0x4, offset = 0x4, fixed_abs, tag = 'smem constant byte address 0x4 - core index']
  #allocation1 [shape = 'u32[144,128]{1,0:T(1,128)}', space=vmem, size = 0x12000, scoped, tag = 'internal scratch']
  %s0 = inlined_call_operand.vmem [shape: f32[2,8,256], index: 0, kind: input, shape index: {}]
  %s1 = inlined_call_operand.vmem [shape: f32[2,4,256], index: 1, kind: input, shape index: {}]
  %s2 = inlined_call_operand.vmem [shape: f32[8,4], index: 2, kind: input, shape index: {}]
  %s3 = inlined_call_operand.vmem [shape: f32[8,1], index: 3, kind: input, shape index: {}]
  %s4 = inlined_call_operand.vmem [shape: f32[8,1], index: 4, kind: input, shape index: {}]
  %s5 = inlined_call_operand.vmem [shape: f32[8,1], index: 5, kind: input, shape index: {}]
  %s6 = inlined_call_operand.vmem [shape: f32[8,1], index: 6, kind: input, shape index: {}]
  %s7 = inlined_call_operand.vmem [shape: f32[2,8,256], index: 7, kind: output, shape index: {}]
  %s8 = sld [smem:[#allocation0]]
  $region61: #{basic_block_forward.5} parent=0
    _
  %s10 = ssub.s32 1, %s8
  %s11 = scalar_select 0, %s10, %s8
  loop: start=0, step=1, limit=4
  $region2: #{basic_block_forward.5} parent=0 // loop_pre_header
    _
  $region3: #{basic_block_forward.5} parent=0 // loop_header
    %s13 = sphi 0, %s17
    %p14 = scmp.ge.s32.totalorder %s13, 4
    %s23 = sphi 0, %s25
    %s26 = sphi 0, %s23
    %s27 = sphi 0, %s26
    %s43 = sphi 0, %s27
    %s49 = sphi 0, %s51
    %s52 = sphi 0, %s49
    %s53 = sphi 0, %s52
    %s69 = sphi 0, %s53
    %s73 = sphi 0, %s73
    %s75 = sphi 0, %s73
    %s76 = sphi 0, %s75
    %s90 = sphi 0, %s76
    %s94 = sphi 0, %s94
    %s96 = sphi 0, %s94
    %s97 = sphi 0, %s96
    %s111 = sphi 0, %s97
    %s115 = sphi 0, %s115
    %s117 = sphi 0, %s115
    %s118 = sphi 0, %s117
    %s132 = sphi 0, %s118
    %s136 = sphi 0, %s136
    %s138 = sphi 0, %s136
    %s139 = sphi 0, %s138
    %s153 = sphi 0, %s139
    %s157 = sphi 0, %s157
    %s159 = sphi 0, %s157
    %s160 = sphi 0, %s159
    %s174 = sphi 0, %s160
    %s180 = sphi 0, %s182
    %s183 = sphi 0, %s180
    %s184 = sphi 0, %s183
    %s200 = sphi 0, %s184
  $region4: #{basic_block_forward.5} parent=0 // loop_header_branch
    %16 = sbr.rel (%p14) target = $region8
  $region5: #{basic_block_forward.5} parent=0 // loop_body
    %s18 = ssub.s32 %s13, 1
    %s19 = ssub.s32 %s13, 2
    %s20 = sadd.s32 %s13, 1
    %s21 = ssub.s32 %s13, %s20
    %p22 = scmp.eq.s32.totalorder %s21, 0
    %s24 = sadd.s32 %s23, 1
    %s25 = scalar_select %p22, %s23, %s24
    %p28 = pneg %p22
    %p29 = scmp.eq.s32.totalorder %s13, 1
    %p30 = por %p28, %p29
    %p31 = scmp.ne.s32.totalorder %s23, %s26
    %p32 = scmp.eq.s32.totalorder %s13, 0
    %p33 = por %p31, %p32
    %p34 = scmp.ne.s32.totalorder %s23, %s26
    %p35 = scmp.eq.s32.totalorder %s18, 1
    %p36 = por %p34, %p35
    %p37 = scmp.ne.s32.totalorder %s26, %s27
    %p38 = scmp.eq.s32.totalorder %s18, 0
    %p39 = por %p37, %p38
    %p40 = scmp.ne.s32.totalorder %s26, %s27
    %p41 = scmp.eq.s32.totalorder %s19, 1
    %p42 = por %p40, %p41
    %p44 = scmp.ne.s32.totalorder %s27, %s43
    %p45 = scmp.eq.s32.totalorder %s19, 0
    %p46 = por %p44, %p45
    %s47 = ssub.s32 %s13, %s20
    %p48 = scmp.eq.s32.totalorder %s47, 0
    %s50 = sadd.s32 %s49, 1
    %s51 = scalar_select %p48, %s49, %s50
    %p54 = pneg %p48
    %p55 = scmp.eq.s32.totalorder %s13, 1
    %p56 = por %p54, %p55
    %p57 = scmp.ne.s32.totalorder %s49, %s52
    %p58 = scmp.eq.s32.totalorder %s13, 0
    %p59 = por %p57, %p58
    %p60 = scmp.ne.s32.totalorder %s49, %s52
    %p61 = scmp.eq.s32.totalorder %s18, 1
    %p62 = por %p60, %p61
    %p63 = scmp.ne.s32.totalorder %s52, %s53
    %p64 = scmp.eq.s32.totalorder %s18, 0
    %p65 = por %p63, %p64
    %p66 = scmp.ne.s32.totalorder %s52, %s53
    %p67 = scmp.eq.s32.totalorder %s19, 1
    %p68 = por %p66, %p67
    %p70 = scmp.ne.s32.totalorder %s53, %s69
    %p71 = scmp.eq.s32.totalorder %s19, 0
    %p72 = por %p70, %p71
    %s74 = sadd.s32 %s73, 1
    %p77 = scmp.eq.s32.totalorder %s13, 1
    %p78 = scmp.ne.s32.totalorder %s73, %s75
    %p79 = scmp.eq.s32.totalorder %s13, 0
    %p80 = por %p78, %p79
    %p81 = scmp.ne.s32.totalorder %s73, %s75
    %p82 = scmp.eq.s32.totalorder %s18, 1
    %p83 = por %p81, %p82
    %p84 = scmp.ne.s32.totalorder %s75, %s76
    %p85 = scmp.eq.s32.totalorder %s18, 0
    %p86 = por %p84, %p85
    %p87 = scmp.ne.s32.totalorder %s75, %s76
    %p88 = scmp.eq.s32.totalorder %s19, 1
    %p89 = por %p87, %p88
    %p91 = scmp.ne.s32.totalorder %s76, %s90
    %p92 = scmp.eq.s32.totalorder %s19, 0
    %p93 = por %p91, %p92
    %s95 = sadd.s32 %s94, 1
    %p98 = scmp.eq.s32.totalorder %s13, 1
    %p99 = scmp.ne.s32.totalorder %s94, %s96
    %p100 = scmp.eq.s32.totalorder %s13, 0
    %p101 = por %p99, %p100
    %p102 = scmp.ne.s32.totalorder %s94, %s96
    %p103 = scmp.eq.s32.totalorder %s18, 1
    %p104 = por %p102, %p103
    %p105 = scmp.ne.s32.totalorder %s96, %s97
    %p106 = scmp.eq.s32.totalorder %s18, 0
    %p107 = por %p105, %p106
    %p108 = scmp.ne.s32.totalorder %s96, %s97
    %p109 = scmp.eq.s32.totalorder %s19, 1
    %p110 = por %p108, %p109
    %p112 = scmp.ne.s32.totalorder %s97, %s111
    %p113 = scmp.eq.s32.totalorder %s19, 0
    %p114 = por %p112, %p113
    %s116 = sadd.s32 %s115, 1
    %p119 = scmp.eq.s32.totalorder %s13, 1
    %p120 = scmp.ne.s32.totalorder %s115, %s117
    %p121 = scmp.eq.s32.totalorder %s13, 0
    %p122 = por %p120, %p121
    %p123 = scmp.ne.s32.totalorder %s115, %s117
    %p124 = scmp.eq.s32.totalorder %s18, 1
    %p125 = por %p123, %p124
    %p126 = scmp.ne.s32.totalorder %s117, %s118
    %p127 = scmp.eq.s32.totalorder %s18, 0
    %p128 = por %p126, %p127
    %p129 = scmp.ne.s32.totalorder %s117, %s118
    %p130 = scmp.eq.s32.totalorder %s19, 1
    %p131 = por %p129, %p130
    %p133 = scmp.ne.s32.totalorder %s118, %s132
    %p134 = scmp.eq.s32.totalorder %s19, 0
    %p135 = por %p133, %p134
    %s137 = sadd.s32 %s136, 1
    %p140 = scmp.eq.s32.totalorder %s13, 1
    %p141 = scmp.ne.s32.totalorder %s136, %s138
    %p142 = scmp.eq.s32.totalorder %s13, 0
    %p143 = por %p141, %p142
    %p144 = scmp.ne.s32.totalorder %s136, %s138
    %p145 = scmp.eq.s32.totalorder %s18, 1
    %p146 = por %p144, %p145
    %p147 = scmp.ne.s32.totalorder %s138, %s139
    %p148 = scmp.eq.s32.totalorder %s18, 0
    %p149 = por %p147, %p148
    %p150 = scmp.ne.s32.totalorder %s138, %s139
    %p151 = scmp.eq.s32.totalorder %s19, 1
    %p152 = por %p150, %p151
    %p154 = scmp.ne.s32.totalorder %s139, %s153
    %p155 = scmp.eq.s32.totalorder %s19, 0
    %p156 = por %p154, %p155
    %s158 = sadd.s32 %s157, 1
    %p161 = scmp.eq.s32.totalorder %s13, 1
    %p162 = scmp.ne.s32.totalorder %s157, %s159
    %p163 = scmp.eq.s32.totalorder %s13, 0
    %p164 = por %p162, %p163
    %p165 = scmp.ne.s32.totalorder %s157, %s159
    %p166 = scmp.eq.s32.totalorder %s18, 1
    %p167 = por %p165, %p166
    %p168 = scmp.ne.s32.totalorder %s159, %s160
    %p169 = scmp.eq.s32.totalorder %s18, 0
    %p170 = por %p168, %p169
    %p171 = scmp.ne.s32.totalorder %s159, %s160
    %p172 = scmp.eq.s32.totalorder %s19, 1
    %p173 = por %p171, %p172
    %p175 = scmp.ne.s32.totalorder %s160, %s174
    %p176 = scmp.eq.s32.totalorder %s19, 0
    %p177 = por %p175, %p176
    %s178 = ssub.s32 %s13, %s20
    %p179 = scmp.eq.s32.totalorder %s178, 0
    %s181 = sadd.s32 %s180, 1
    %s182 = scalar_select %p179, %s180, %s181
    %p185 = pneg %p179
    %p186 = scmp.eq.s32.totalorder %s13, 1
    %p187 = por %p185, %p186
    %p188 = scmp.ne.s32.totalorder %s180, %s183
    %p189 = scmp.eq.s32.totalorder %s13, 0
    %p190 = por %p188, %p189
    %p191 = scmp.ne.s32.totalorder %s180, %s183
    %p192 = scmp.eq.s32.totalorder %s18, 1
    %p193 = por %p191, %p192
    %p194 = scmp.ne.s32.totalorder %s183, %s184
    %p195 = scmp.eq.s32.totalorder %s18, 0
    %p196 = por %p194, %p195
    %p197 = scmp.ne.s32.totalorder %s183, %s184
    %p198 = scmp.eq.s32.totalorder %s19, 1
    %p199 = por %p197, %p198
    %p201 = scmp.ne.s32.totalorder %s184, %s200
    %p202 = scmp.eq.s32.totalorder %s19, 0
    %p203 = por %p201, %p202
    %p204 = scmp.le.s32.totalorder 1, %s13
    %p205 = scmp.lt.s32.totalorder %s13, 3
    %p206 = pnand %p204, %p205
    %p207 = pneg %p206
    // Predicated region
    $region9: #{basic_block_forward.5} parent=5 // pred_check
      _
    $region10: #{basic_block_forward.5} parent=5 // pred_check_branch
      %209 = sbr.rel (%p206) target = $region12
    $region11: #{basic_block_forward.5} parent=5 // pred_region
      %s210 = ssub.s32 %s13, 1
      // Predicated region
      $region13: #{basic_block_forward.5} parent=11 // pred_check
        %p211 = pneg %p86
      $region14: #{basic_block_forward.5} parent=11 // pred_check_branch
        %213 = sbr.rel (%p211) target = $region16
      $region15: #{basic_block_forward.5} parent=11 // pred_region
        _
      $region16: #{basic_block_forward.5} parent=11 // pred_fallthru
        _
      // Predicated region
      $region17: #{basic_block_forward.5} parent=11 // pred_check
        %p214 = pneg %p107
      $region18: #{basic_block_forward.5} parent=11 // pred_check_branch
        %216 = sbr.rel (%p214) target = $region20
      $region19: #{basic_block_forward.5} parent=11 // pred_region
        _
      $region20: #{basic_block_forward.5} parent=11 // pred_fallthru
        _
      // Predicated region
      $region21: #{basic_block_forward.5} parent=11 // pred_check
        %p217 = pneg %p128
      $region22: #{basic_block_forward.5} parent=11 // pred_check_branch
        %219 = sbr.rel (%p217) target = $region24
      $region23: #{basic_block_forward.5} parent=11 // pred_region
        _
      $region24: #{basic_block_forward.5} parent=11 // pred_fallthru
        _
      // Predicated region
      $region25: #{basic_block_forward.5} parent=11 // pred_check
        %p220 = pneg %p149
      $region26: #{basic_block_forward.5} parent=11 // pred_check_branch
        %222 = sbr.rel (%p220) target = $region28
      $region27: #{basic_block_forward.5} parent=11 // pred_region
        _
      $region28: #{basic_block_forward.5} parent=11 // pred_fallthru
        _
      // Predicated region
      $region29: #{basic_block_forward.5} parent=11 // pred_check
        %p223 = pneg %p170
      $region30: #{basic_block_forward.5} parent=11 // pred_check_branch
        %225 = sbr.rel (%p223) target = $region32
      $region31: #{basic_block_forward.5} parent=11 // pred_region
        _
      $region32: #{basic_block_forward.5} parent=11 // pred_fallthru
        _
    $region12: #{basic_block_forward.5} parent=5 // pred_fallthru
      _
    %p226 = scmp.lt.s32.totalorder %s13, 2
    // Predicated region
    $region33: #{basic_block_forward.5} parent=5 // pred_check
      %p227 = pneg %p226
    $region34: #{basic_block_forward.5} parent=5 // pred_check_branch
      %229 = sbr.rel (%p227) target = $region36
    $region35: #{basic_block_forward.5} parent=5 // pred_region
      // Predicated region
      $region37: #{basic_block_forward.5} parent=35 // pred_check
        %p230 = pneg %p33
      $region38: #{basic_block_forward.5} parent=35 // pred_check_branch
        %232 = sbr.rel (%p230) target = $region40
      $region39: #{basic_block_forward.5} parent=35 // pred_region
        %p233 = scmp.lt.s32.totalorder %s13, 1
        %s234 = scalar_select %p233, %s13, 1
        %s235 = smul.addr %s234, 2
        %s236 = smul.addr %s235, 8
        %s237 = scalar_lea.vmem %s0, %s236
      $region40: #{basic_block_forward.5} parent=35 // pred_fallthru
        _
      // Predicated region
      $region41: #{basic_block_forward.5} parent=35 // pred_check
        %p238 = pneg %p59
      $region42: #{basic_block_forward.5} parent=35 // pred_check_branch
        %240 = sbr.rel (%p238) target = $region44
      $region43: #{basic_block_forward.5} parent=35 // pred_region
        %p241 = scmp.lt.s32.totalorder %s13, 1
        %s242 = scalar_select %p241, %s13, 1
        %s243 = smul.addr %s242, 2
        %s244 = smul.addr %s243, 4
        %s245 = scalar_lea.vmem %s1, %s244
      $region44: #{basic_block_forward.5} parent=35 // pred_fallthru
        _
    $region36: #{basic_block_forward.5} parent=5 // pred_fallthru
      _
    %p246 = scmp.le.s32.totalorder 1, %s13
    %p247 = scmp.lt.s32.totalorder %s13, 3
    %p248 = pnand %p246, %p247
    %p249 = pneg %p248
    // Predicated region
    $region45: #{basic_block_forward.5} parent=5 // pred_check
      _
    $region46: #{basic_block_forward.5} parent=5 // pred_check_branch
      %251 = sbr.rel (%p248) target = $region48
    $region47: #{basic_block_forward.5} parent=5 // pred_region
      %s252 = ssub.s32 %s13, 1
      %p253 = scmp.lt.s32.totalorder %s18, 1
      %s254 = scalar_select %p253, %s18, 1
      %s255 = smul.addr %s254, 2
      %s256 = smul.addr %s255, 8
      %s257 = scalar_lea.vmem %s0, %s256
      %p258 = pneg %p39
      %p259 = pneg %p36
      %p260 = scmp.lt.s32.totalorder %s18, 1
      %s261 = scalar_select %p260, %s18, 1
      %s262 = smul.addr %s261, 2
      %s263 = smul.addr %s262, 4
      %s264 = scalar_lea.vmem %s1, %s263
      %p265 = pneg %p65
      %p266 = pneg %p62
      %p267 = pneg %p86
      %p268 = pneg %p83
      %p269 = pneg %p107
      %p270 = pneg %p104
      %p271 = pneg %p128
      %p272 = pneg %p125
      %p273 = pneg %p149
      %p274 = pneg %p146
      %p275 = pneg %p170
      %p276 = pneg %p167
      %p277 = pneg %p196
      %p278 = pneg %p193
      %p279 = scmp.lt.s32.totalorder %s18, 1
      %s280 = scalar_select %p279, %s18, 1
      %s281 = smul.addr %s280, 2
      %s282 = smul.addr %s281, 8
      %s283 = scalar_lea.vmem %s7, %s282
      %p284 = scmp.lt.s32.totalorder %s18, 1
      %s285 = scalar_select %p284, %s18, 1
      %s286 = smul.addr %s285, 2
      %s287 = smul.addr %s286, 8
      %s288 = scalar_lea.vmem %s0, %s287
      %p289 = scmp.lt.s32.totalorder %s18, 1
      %s290 = scalar_select %p289, %s18, 1
      %s291 = smul.addr %s290, 2
      %s292 = smul.addr %s291, 4
      %s293 = scalar_lea.vmem %s1, %s292
      %p294 = scmp.lt.s32.totalorder %s18, 1
      %s295 = scalar_select %p294, %s18, 1
      %s296 = smul.addr %s295, 2
      %s297 = smul.addr %s296, 8
      %s298 = scalar_lea.vmem %s7, %s297
      %v299 = vld [vmem:[%s288] sm:$0xff]
      %v300 = vld [vmem:[%s288 + $0x8] sm:$0xff]
      %v301 = vld [vmem:[%s3] sm:$0xff]
      %303 = vset.pattern.permute.xlu0 0
      %304 = vperm.xlu0 %303, %v301
      %v305 = vpop.permute.xlu0 %304
      %v307 = vmul.f32 %v299, %v305
      %v308 = vmul.f32 %v300, %v305
      %v309 = vld [vmem:[%s4] sm:$0xff]
      %311 = vset.pattern.permute.xlu0 0
      %312 = vperm.xlu0 %311, %v309
      %v313 = vpop.permute.xlu0 %312
      %v315 = vadd.f32 %v307, %v313
      %v316 = vadd.f32 %v308, %v313
      %v317 = vld [vmem:[%s2] sm:$0xff]
      %v318 = vld [vmem:[%s293] sm:$0xff]
      %v320 = vcombine.high %v318, %v318
      %vm321 = vcmask 31744
      %v323 = vsel %vm321, %v317, 0
      %vm325 = vcmask 1043456
      %v326 = vsel %vm325, %v318, 0
      %v328 = vsel %vm325, %v320, 0
      %330 = vmatprep.subr.mxu0 0.0
      %331 = vmatpush1.msra.mxu0 0.0
      %332 = vmatprep.subr.mxu0 0.0
      %333 = vmatpush1.msra.mxu0 0.0
      %334 = vmatprep.subr.mxu0 0.0
      %335 = vmatpush1.msra.mxu0 0.0
      %336 = vmatprep.subr.mxu0 0.0
      %337 = vmatpush1.msra.mxu0 0.0
      %338 = vmatprep.subr.mxu0 0.0
      %339 = vmatpush1.msra.mxu0 0.0
      %340 = vmatprep.subr.mxu0 0.0
      %341 = vmatpush1.msra.mxu0 0.0
      %342 = vmatprep.subr.mxu0 0.0
      %343 = vmatpush1.msra.mxu0 0.0
      %344 = vmatprep.subr.mxu0 0.0
      %345 = vmatpush1.msra.mxu0 0.0
      %346 = vmatprep.subr.mxu0 0.0
      %347 = vmatpush1.msra.mxu0 0.0
      %348 = vmatprep.subr.mxu0 0.0
      %349 = vmatpush1.msra.mxu0 0.0
      %350 = vmatprep.subr.mxu0 0.0
      %351 = vmatpush1.msra.mxu0 0.0
      %352 = vmatprep.subr.mxu0 0.0
      %353 = vmatpush1.msra.mxu0 0.0
      %354 = vmatprep.subr.mxu0 0.0
      %355 = vmatpush1.msra.mxu0 0.0
      %356 = vmatprep.subr.mxu0 0.0
      %357 = vmatpush1.msra.mxu0 0.0
      %358 = vmatprep.subr.mxu0 0.0
      %359 = vmatpush1.msra.mxu0 0.0
      %360 = vmatprep.subr.mxu0 %v328
      %361 = vmatpush1.msra.mxu0 %v326
      %362 = vmatprep.subr.mxu0 0.0
      %363 = vmatpush2.msra.mxu0 0.0
      %364 = vmatprep.subr.mxu0 0.0
      %365 = vmatpush2.msra.mxu0 0.0
      %366 = vmatprep.subr.mxu0 0.0
      %367 = vmatpush2.msra.mxu0 0.0
      %368 = vmatprep.subr.mxu0 0.0
      %369 = vmatpush2.msra.mxu0 0.0
      %370 = vmatprep.subr.mxu0 0.0
      %371 = vmatpush2.msra.mxu0 0.0
      %372 = vmatprep.subr.mxu0 0.0
      %373 = vmatpush2.msra.mxu0 0.0
      %374 = vmatprep.subr.mxu0 0.0
      %375 = vmatpush2.msra.mxu0 0.0
      %376 = vmatprep.subr.mxu0 0.0
      %377 = vmatpush2.msra.mxu0 0.0
      %378 = vmatprep.subr.mxu0 0.0
      %379 = vmatpush2.msra.mxu0 0.0
      %380 = vmatprep.subr.mxu0 0.0
      %381 = vmatpush2.msra.mxu0 0.0
      %382 = vmatprep.subr.mxu0 0.0
      %383 = vmatpush2.msra.mxu0 0.0
      %384 = vmatprep.subr.mxu0 0.0
      %385 = vmatpush2.msra.mxu0 0.0
      %386 = vmatprep.subr.mxu0 0.0
      %387 = vmatpush2.msra.mxu0 0.0
      %388 = vmatprep.subr.mxu0 0.0
      %389 = vmatpush2.msra.mxu0 0.0
      %390 = vmatprep.subr.mxu0 0.0
      %391 = vmatpush2.msra.mxu0 0.0
      %392 = vmatprep.subr.mxu0 0.0
      %393 = vmatpush2.msra.mxu0 0.0
      %394 = vmatprep.mubr.f32.mxu0 0.0
      %395 = vmatmul.mubr.f32.gmra.mxu0 %v323
      %v396 = vpop.f32.mrf.mxu0
      %v397 = vadd.f32 0.0, %v396
      %v398 = vpop.f32.mrf.mxu0
      %v399 = vadd.f32 0.0, %v398
      %400 = vdwg.mxu0
      %v401 = vld [vmem:[%s5] sm:$0xff]
      %403 = vset.pattern.permute.xlu0 0
      %404 = vperm.xlu0 %403, %v401
      %v405 = vpop.permute.xlu0 %404
      %v407 = vmul.f32 %v397, %v405
      %v408 = vmul.f32 %v399, %v405
      %v409 = vld [vmem:[%s6] sm:$0xff]
      %411 = vset.pattern.permute.xlu0 0
      %412 = vperm.xlu0 %411, %v409
      %v413 = vpop.permute.xlu0 %412
      %v415 = vadd.f32 %v407, %v413
      %v416 = vadd.f32 %v408, %v413
      %v417 = vadd.f32 %v315, %v415
      %v418 = vadd.f32 %v316, %v416
      %v419 = vmax.f32 %v417, 0.0
      %v420 = vmax.f32 %v418, 0.0
      %421 = vst [vmem:[%s298] sm:$0xff] %v419
      %422 = vst [vmem:[%s298 + $0x8] sm:$0xff] %v420
      %p423 = scmp.lt.s32.totalorder %s18, 1
      %s424 = scalar_select %p423, %s18, 1
      %s425 = smul.addr %s424, 2
      %s426 = smul.addr %s425, 8
      %s427 = scalar_lea.vmem %s7, %s426
      // Predicated region
      $region49: #{basic_block_forward.5} parent=47 // pred_check
        %p428 = pneg %p193
      $region50: #{basic_block_forward.5} parent=47 // pred_check_branch
        %430 = sbr.rel (%p428) target = $region52
      $region51: #{basic_block_forward.5} parent=47 // pred_region
        _
      $region52: #{basic_block_forward.5} parent=47 // pred_fallthru
        _
    $region48: #{basic_block_forward.5} parent=5 // pred_fallthru
      _
    %p431 = scmp.le.s32.totalorder 2, %s13
    // Predicated region
    $region53: #{basic_block_forward.5} parent=5 // pred_check
      %p432 = pneg %p431
    $region54: #{basic_block_forward.5} parent=5 // pred_check_branch
      %434 = sbr.rel (%p432) target = $region56
    $region55: #{basic_block_forward.5} parent=5 // pred_region
      %s435 = ssub.s32 %s13, 2
      // Predicated region
      $region57: #{basic_block_forward.5} parent=55 // pred_check
        %p436 = pneg %p199
      $region58: #{basic_block_forward.5} parent=55 // pred_check_branch
        %438 = sbr.rel (%p436) target = $region60
      $region59: #{basic_block_forward.5} parent=55 // pred_region
        %p439 = scmp.lt.s32.totalorder %s19, 1
        %s440 = scalar_select %p439, %s19, 1
        %s441 = smul.addr %s440, 2
        %s442 = smul.addr %s441, 8
        %s443 = scalar_lea.vmem %s7, %s442
      $region60: #{basic_block_forward.5} parent=55 // pred_fallthru
        _
    $region56: #{basic_block_forward.5} parent=5 // pred_fallthru
      _
  $region6: #{basic_block_forward.5} parent=0 // loop_footer
    %s17 = sadd.s32 1, %s13
  $region7: #{basic_block_forward.5} parent=0 // loop_footer_branch
    %12 = sbr.rel target = $region3
  $region8: #{basic_block_forward.5} parent=0 // loop_exit
    _

// kernel: basic_block_forward.4
$region0: #{basic_block_forward.4}
  #allocation0 [shape = 'u32[]', space=smem, size = 0x4, offset = 0x4, fixed_abs, tag = 'smem constant byte address 0x4 - core index']
  #allocation1 [shape = 'u32[144,128]{1,0:T(1,128)}', space=vmem, size = 0x12000, scoped, tag = 'internal scratch']
  %s0 = inlined_call_operand.vmem [shape: f32[2,8,324], index: 0, kind: input, shape index: {}]
  %s1 = inlined_call_operand.vmem [shape: f32[8,1], index: 1, kind: input, shape index: {}]
  %s2 = inlined_call_operand.vmem [shape: f32[8,1], index: 2, kind: input, shape index: {}]
  %s3 = inlined_call_operand.vmem [shape: f32[8,72], index: 3, kind: input, shape index: {}]
  %s4 = inlined_call_operand.vmem [shape: f32[1,324], index: 4, kind: input, shape index: {}]
  %s5 = inlined_call_operand.vmem [shape: f32[2,8,256], index: 5, kind: output, shape index: {0}]
  %s6 = inlined_call_operand.vmem [shape: f32[2,8,1], index: 6, kind: output, shape index: {1}]
  %s7 = inlined_call_operand.vmem [shape: f32[2,8,1], index: 7, kind: output, shape index: {2}]
  %8 = xla_tuple %s5, %s6, %s7
  %s9 = sld [smem:[#allocation0]]
  $region69: #{basic_block_forward.4} parent=0
    _
  %s11 = ssub.s32 1, %s9
  %s12 = scalar_select 0, %s11, %s9
  loop: start=0, step=1, limit=4
  $region2: #{basic_block_forward.4} parent=0 // loop_pre_header
    _
  $region3: #{basic_block_forward.4} parent=0 // loop_header
    %s14 = sphi 0, %s18
    %p15 = scmp.ge.s32.totalorder %s14, 4
    %s24 = sphi 0, %s26
    %s27 = sphi 0, %s24
    %s28 = sphi 0, %s27
    %s44 = sphi 0, %s28
    %s48 = sphi 0, %s48
    %s50 = sphi 0, %s48
    %s51 = sphi 0, %s50
    %s65 = sphi 0, %s51
    %s69 = sphi 0, %s69
    %s71 = sphi 0, %s69
    %s72 = sphi 0, %s71
    %s86 = sphi 0, %s72
    %s90 = sphi 0, %s90
    %s92 = sphi 0, %s90
    %s93 = sphi 0, %s92
    %s107 = sphi 0, %s93
    %s111 = sphi 0, %s111
    %s113 = sphi 0, %s111
    %s114 = sphi 0, %s113
    %s128 = sphi 0, %s114
    %s134 = sphi 0, %s136
    %s137 = sphi 0, %s134
    %s138 = sphi 0, %s137
    %s154 = sphi 0, %s138
    %s160 = sphi 0, %s162
    %s163 = sphi 0, %s160
    %s164 = sphi 0, %s163
    %s180 = sphi 0, %s164
    %s186 = sphi 0, %s188
    %s189 = sphi 0, %s186
    %s190 = sphi 0, %s189
    %s206 = sphi 0, %s190
  $region4: #{basic_block_forward.4} parent=0 // loop_header_branch
    %17 = sbr.rel (%p15) target = $region8
  $region5: #{basic_block_forward.4} parent=0 // loop_body
    %s19 = ssub.s32 %s14, 1
    %s20 = ssub.s32 %s14, 2
    %s21 = sadd.s32 %s14, 1
    %s22 = ssub.s32 %s14, %s21
    %p23 = scmp.eq.s32.totalorder %s22, 0
    %s25 = sadd.s32 %s24, 1
    %s26 = scalar_select %p23, %s24, %s25
    %p29 = pneg %p23
    %p30 = scmp.eq.s32.totalorder %s14, 1
    %p31 = por %p29, %p30
    %p32 = scmp.ne.s32.totalorder %s24, %s27
    %p33 = scmp.eq.s32.totalorder %s14, 0
    %p34 = por %p32, %p33
    %p35 = scmp.ne.s32.totalorder %s24, %s27
    %p36 = scmp.eq.s32.totalorder %s19, 1
    %p37 = por %p35, %p36
    %p38 = scmp.ne.s32.totalorder %s27, %s28
    %p39 = scmp.eq.s32.totalorder %s19, 0
    %p40 = por %p38, %p39
    %p41 = scmp.ne.s32.totalorder %s27, %s28
    %p42 = scmp.eq.s32.totalorder %s20, 1
    %p43 = por %p41, %p42
    %p45 = scmp.ne.s32.totalorder %s28, %s44
    %p46 = scmp.eq.s32.totalorder %s20, 0
    %p47 = por %p45, %p46
    %s49 = sadd.s32 %s48, 1
    %p52 = scmp.eq.s32.totalorder %s14, 1
    %p53 = scmp.ne.s32.totalorder %s48, %s50
    %p54 = scmp.eq.s32.totalorder %s14, 0
    %p55 = por %p53, %p54
    %p56 = scmp.ne.s32.totalorder %s48, %s50
    %p57 = scmp.eq.s32.totalorder %s19, 1
    %p58 = por %p56, %p57
    %p59 = scmp.ne.s32.totalorder %s50, %s51
    %p60 = scmp.eq.s32.totalorder %s19, 0
    %p61 = por %p59, %p60
    %p62 = scmp.ne.s32.totalorder %s50, %s51
    %p63 = scmp.eq.s32.totalorder %s20, 1
    %p64 = por %p62, %p63
    %p66 = scmp.ne.s32.totalorder %s51, %s65
    %p67 = scmp.eq.s32.totalorder %s20, 0
    %p68 = por %p66, %p67
    %s70 = sadd.s32 %s69, 1
    %p73 = scmp.eq.s32.totalorder %s14, 1
    %p74 = scmp.ne.s32.totalorder %s69, %s71
    %p75 = scmp.eq.s32.totalorder %s14, 0
    %p76 = por %p74, %p75
    %p77 = scmp.ne.s32.totalorder %s69, %s71
    %p78 = scmp.eq.s32.totalorder %s19, 1
    %p79 = por %p77, %p78
    %p80 = scmp.ne.s32.totalorder %s71, %s72
    %p81 = scmp.eq.s32.totalorder %s19, 0
    %p82 = por %p80, %p81
    %p83 = scmp.ne.s32.totalorder %s71, %s72
    %p84 = scmp.eq.s32.totalorder %s20, 1
    %p85 = por %p83, %p84
    %p87 = scmp.ne.s32.totalorder %s72, %s86
    %p88 = scmp.eq.s32.totalorder %s20, 0
    %p89 = por %p87, %p88
    %s91 = sadd.s32 %s90, 1
    %p94 = scmp.eq.s32.totalorder %s14, 1
    %p95 = scmp.ne.s32.totalorder %s90, %s92
    %p96 = scmp.eq.s32.totalorder %s14, 0
    %p97 = por %p95, %p96
    %p98 = scmp.ne.s32.totalorder %s90, %s92
    %p99 = scmp.eq.s32.totalorder %s19, 1
    %p100 = por %p98, %p99
    %p101 = scmp.ne.s32.totalorder %s92, %s93
    %p102 = scmp.eq.s32.totalorder %s19, 0
    %p103 = por %p101, %p102
    %p104 = scmp.ne.s32.totalorder %s92, %s93
    %p105 = scmp.eq.s32.totalorder %s20, 1
    %p106 = por %p104, %p105
    %p108 = scmp.ne.s32.totalorder %s93, %s107
    %p109 = scmp.eq.s32.totalorder %s20, 0
    %p110 = por %p108, %p109
    %s112 = sadd.s32 %s111, 1
    %p115 = scmp.eq.s32.totalorder %s14, 1
    %p116 = scmp.ne.s32.totalorder %s111, %s113
    %p117 = scmp.eq.s32.totalorder %s14, 0
    %p118 = por %p116, %p117
    %p119 = scmp.ne.s32.totalorder %s111, %s113
    %p120 = scmp.eq.s32.totalorder %s19, 1
    %p121 = por %p119, %p120
    %p122 = scmp.ne.s32.totalorder %s113, %s114
    %p123 = scmp.eq.s32.totalorder %s19, 0
    %p124 = por %p122, %p123
    %p125 = scmp.ne.s32.totalorder %s113, %s114
    %p126 = scmp.eq.s32.totalorder %s20, 1
    %p127 = por %p125, %p126
    %p129 = scmp.ne.s32.totalorder %s114, %s128
    %p130 = scmp.eq.s32.totalorder %s20, 0
    %p131 = por %p129, %p130
    %s132 = ssub.s32 %s14, %s21
    %p133 = scmp.eq.s32.totalorder %s132, 0
    %s135 = sadd.s32 %s134, 1
    %s136 = scalar_select %p133, %s134, %s135
    %p139 = pneg %p133
    %p140 = scmp.eq.s32.totalorder %s14, 1
    %p141 = por %p139, %p140
    %p142 = scmp.ne.s32.totalorder %s134, %s137
    %p143 = scmp.eq.s32.totalorder %s14, 0
    %p144 = por %p142, %p143
    %p145 = scmp.ne.s32.totalorder %s134, %s137
    %p146 = scmp.eq.s32.totalorder %s19, 1
    %p147 = por %p145, %p146
    %p148 = scmp.ne.s32.totalorder %s137, %s138
    %p149 = scmp.eq.s32.totalorder %s19, 0
    %p150 = por %p148, %p149
    %p151 = scmp.ne.s32.totalorder %s137, %s138
    %p152 = scmp.eq.s32.totalorder %s20, 1
    %p153 = por %p151, %p152
    %p155 = scmp.ne.s32.totalorder %s138, %s154
    %p156 = scmp.eq.s32.totalorder %s20, 0
    %p157 = por %p155, %p156
    %s158 = ssub.s32 %s14, %s21
    %p159 = scmp.eq.s32.totalorder %s158, 0
    %s161 = sadd.s32 %s160, 1
    %s162 = scalar_select %p159, %s160, %s161
    %p165 = pneg %p159
    %p166 = scmp.eq.s32.totalorder %s14, 1
    %p167 = por %p165, %p166
    %p168 = scmp.ne.s32.totalorder %s160, %s163
    %p169 = scmp.eq.s32.totalorder %s14, 0
    %p170 = por %p168, %p169
    %p171 = scmp.ne.s32.totalorder %s160, %s163
    %p172 = scmp.eq.s32.totalorder %s19, 1
    %p173 = por %p171, %p172
    %p174 = scmp.ne.s32.totalorder %s163, %s164
    %p175 = scmp.eq.s32.totalorder %s19, 0
    %p176 = por %p174, %p175
    %p177 = scmp.ne.s32.totalorder %s163, %s164
    %p178 = scmp.eq.s32.totalorder %s20, 1
    %p179 = por %p177, %p178
    %p181 = scmp.ne.s32.totalorder %s164, %s180
    %p182 = scmp.eq.s32.totalorder %s20, 0
    %p183 = por %p181, %p182
    %s184 = ssub.s32 %s14, %s21
    %p185 = scmp.eq.s32.totalorder %s184, 0
    %s187 = sadd.s32 %s186, 1
    %s188 = scalar_select %p185, %s186, %s187
    %p191 = pneg %p185
    %p192 = scmp.eq.s32.totalorder %s14, 1
    %p193 = por %p191, %p192
    %p194 = scmp.ne.s32.totalorder %s186, %s189
    %p195 = scmp.eq.s32.totalorder %s14, 0
    %p196 = por %p194, %p195
    %p197 = scmp.ne.s32.totalorder %s186, %s189
    %p198 = scmp.eq.s32.totalorder %s19, 1
    %p199 = por %p197, %p198
    %p200 = scmp.ne.s32.totalorder %s189, %s190
    %p201 = scmp.eq.s32.totalorder %s19, 0
    %p202 = por %p200, %p201
    %p203 = scmp.ne.s32.totalorder %s189, %s190
    %p204 = scmp.eq.s32.totalorder %s20, 1
    %p205 = por %p203, %p204
    %p207 = scmp.ne.s32.totalorder %s190, %s206
    %p208 = scmp.eq.s32.totalorder %s20, 0
    %p209 = por %p207, %p208
    %p210 = scmp.le.s32.totalorder 1, %s14
    %p211 = scmp.lt.s32.totalorder %s14, 3
    %p212 = pnand %p210, %p211
    %p213 = pneg %p212
    // Predicated region
    $region9: #{basic_block_forward.4} parent=5 // pred_check
      _
    $region10: #{basic_block_forward.4} parent=5 // pred_check_branch
      %215 = sbr.rel (%p212) target = $region12
    $region11: #{basic_block_forward.4} parent=5 // pred_region
      %s216 = ssub.s32 %s14, 1
      // Predicated region
      $region13: #{basic_block_forward.4} parent=11 // pred_check
        %p217 = pneg %p61
      $region14: #{basic_block_forward.4} parent=11 // pred_check_branch
        %219 = sbr.rel (%p217) target = $region16
      $region15: #{basic_block_forward.4} parent=11 // pred_region
        _
      $region16: #{basic_block_forward.4} parent=11 // pred_fallthru
        _
      // Predicated region
      $region17: #{basic_block_forward.4} parent=11 // pred_check
        %p220 = pneg %p82
      $region18: #{basic_block_forward.4} parent=11 // pred_check_branch
        %222 = sbr.rel (%p220) target = $region20
      $region19: #{basic_block_forward.4} parent=11 // pred_region
        _
      $region20: #{basic_block_forward.4} parent=11 // pred_fallthru
        _
      // Predicated region
      $region21: #{basic_block_forward.4} parent=11 // pred_check
        %p223 = pneg %p103
      $region22: #{basic_block_forward.4} parent=11 // pred_check_branch
        %225 = sbr.rel (%p223) target = $region24
      $region23: #{basic_block_forward.4} parent=11 // pred_region
        _
      $region24: #{basic_block_forward.4} parent=11 // pred_fallthru
        _
      // Predicated region
      $region25: #{basic_block_forward.4} parent=11 // pred_check
        %p226 = pneg %p124
      $region26: #{basic_block_forward.4} parent=11 // pred_check_branch
        %228 = sbr.rel (%p226) target = $region28
      $region27: #{basic_block_forward.4} parent=11 // pred_region
        _
      $region28: #{basic_block_forward.4} parent=11 // pred_fallthru
        _
    $region12: #{basic_block_forward.4} parent=5 // pred_fallthru
      _
    %p229 = scmp.lt.s32.totalorder %s14, 2
    // Predicated region
    $region29: #{basic_block_forward.4} parent=5 // pred_check
      %p230 = pneg %p229
    $region30: #{basic_block_forward.4} parent=5 // pred_check_branch
      %232 = sbr.rel (%p230) target = $region32
    $region31: #{basic_block_forward.4} parent=5 // pred_region
      // Predicated region
      $region33: #{basic_block_forward.4} parent=31 // pred_check
        %p233 = pneg %p34
      $region34: #{basic_block_forward.4} parent=31 // pred_check_branch
        %235 = sbr.rel (%p233) target = $region36
      $region35: #{basic_block_forward.4} parent=31 // pred_region
        %p236 = scmp.lt.s32.totalorder %s14, 1
        %s237 = scalar_select %p236, %s14, 1
        %s238 = smul.addr %s237, 3
        %s239 = smul.addr %s238, 8
        %s240 = scalar_lea.vmem %s0, %s239
      $region36: #{basic_block_forward.4} parent=31 // pred_fallthru
        _
    $region32: #{basic_block_forward.4} parent=5 // pred_fallthru
      _
    %p241 = scmp.le.s32.totalorder 1, %s14
    %p242 = scmp.lt.s32.totalorder %s14, 3
    %p243 = pnand %p241, %p242
    %p244 = pneg %p243
    // Predicated region
    $region37: #{basic_block_forward.4} parent=5 // pred_check
      _
    $region38: #{basic_block_forward.4} parent=5 // pred_check_branch
      %246 = sbr.rel (%p243) target = $region40
    $region39: #{basic_block_forward.4} parent=5 // pred_region
      %s247 = ssub.s32 %s14, 1
      %p248 = scmp.lt.s32.totalorder %s19, 1
      %s249 = scalar_select %p248, %s19, 1
      %s250 = smul.addr %s249, 3
      %s251 = smul.addr %s250, 8
      %s252 = scalar_lea.vmem %s0, %s251
      %p253 = pneg %p40
      %p254 = pneg %p37
      %p255 = pneg %p61
      %p256 = pneg %p58
      %p257 = pneg %p82
      %p258 = pneg %p79
      %p259 = pneg %p103
      %p260 = pneg %p100
      %p261 = pneg %p124
      %p262 = pneg %p121
      %p263 = pneg %p150
      %p264 = pneg %p147
      %p265 = scmp.lt.s32.totalorder %s19, 1
      %s266 = scalar_select %p265, %s19, 1
      %s267 = smul.addr %s266, 2
      %s268 = smul.addr %s267, 8
      %s269 = scalar_lea.vmem %s5, %s268
      %p270 = pneg %p176
      %p271 = pneg %p173
      %p272 = scmp.lt.s32.totalorder %s19, 1
      %s273 = scalar_select %p272, %s19, 1
      %s274 = smul.addr %s273, 8
      %s275 = scalar_lea.vmem %s6, %s274
      %p276 = pneg %p202
      %p277 = pneg %p199
      %p278 = scmp.lt.s32.totalorder %s19, 1
      %s279 = scalar_select %p278, %s19, 1
      %s280 = smul.addr %s279, 8
      %s281 = scalar_lea.vmem %s7, %s280
      %p282 = scmp.lt.s32.totalorder %s19, 1
      %s283 = scalar_select %p282, %s19, 1
      %s284 = smul.addr %s283, 3
      %s285 = smul.addr %s284, 8
      %s286 = scalar_lea.vmem %s0, %s285
      %p287 = scmp.lt.s32.totalorder %s19, 1
      %s288 = scalar_select %p287, %s19, 1
      %s289 = smul.addr %s288, 2
      %s290 = smul.addr %s289, 8
      %s291 = scalar_lea.vmem %s5, %s290
      %p292 = scmp.lt.s32.totalorder %s19, 1
      %s293 = scalar_select %p292, %s19, 1
      %s294 = smul.addr %s293, 8
      %s295 = scalar_lea.vmem %s6, %s294
      %p296 = scmp.lt.s32.totalorder %s19, 1
      %s297 = scalar_select %p296, %s19, 1
      %s298 = smul.addr %s297, 8
      %s299 = scalar_lea.vmem %s7, %s298
      %v300 = vld [vmem:[%s286] sm:$0xff]
      %v301 = vld [vmem:[%s286 + $0x8] sm:$0xff]
      %v302 = vld [vmem:[%s286 + $0x10] sm:$0xff]
      %v303 = vld [vmem:[%s1] sm:$0xff]
      %305 = vset.pattern.permute.xlu0 0
      %306 = vperm.xlu0 %305, %v303
      %v307 = vpop.permute.xlu0 %306
      %v309 = vmul.f32 %v300, %v307
      %v310 = vmul.f32 %v301, %v307
      %v311 = vmul.f32 %v302, %v307
      %v312 = vld [vmem:[%s2] sm:$0xff]
      %314 = vset.pattern.permute.xlu0 0
      %315 = vperm.xlu0 %314, %v312
      %v316 = vpop.permute.xlu0 %315
      %v318 = vadd.f32 %v309, %v316
      %v319 = vadd.f32 %v310, %v316
      %v320 = vadd.f32 %v311, %v316
      %v321 = vmax.f32 %v318, 0.0
      %v322 = vmax.f32 %v319, 0.0
      %v323 = vmax.f32 %v320, 0.0
      %v324 = vld [vmem:[%s4] sm:$0x7]
      %v326 = vlaneseq
      %v327 = vshrl.u32 %v326, 7
      %v328 = vsub.s32 0, %v327
      %v329 = vrot.slane %v324, %v328
      %v330 = vlaneseq
      %v331 = vshrl.u32 %v330, 7
      %v332 = vsub.s32 1, %v331
      %v333 = vrot.slane %v324, %v332
      %v334 = vlaneseq
      %v335 = vshrl.u32 %v334, 7
      %v336 = vsub.s32 2, %v335
      %v337 = vrot.slane %v324, %v336
      %v341 = vmul.f32 %v321, %v329
      %v342 = vmul.f32 %v322, %v333
      %v343 = vmul.f32 %v323, %v337
      %v344 = vld [vmem:[%s3] sm:$0xff]
      %348 = vrot.lane.b32.xlu0 %v341, 127
      %v349 = vpop.permute.xlu0 %348
      %350 = vrot.lane.b32.xlu0 %v342, 127
      %v351 = vpop.permute.xlu0 %350
      %352 = vrot.lane.b32.xlu0 %v343, 127
      %v353 = vpop.permute.xlu0 %352
      %vm354 = vcmask 1039360
      %v355 = vsel %vm354, %v349, %v351
      %v356 = vsel %vm354, %v351, %v353
      %360 = vrot.lane.b32.xlu0 %v341, 126
      %v361 = vpop.permute.xlu0 %360
      %362 = vrot.lane.b32.xlu0 %v342, 126
      %v363 = vpop.permute.xlu0 %362
      %364 = vrot.lane.b32.xlu0 %v343, 126
      %v365 = vpop.permute.xlu0 %364
      %vm366 = vcmask 1031168
      %v367 = vsel %vm366, %v361, %v363
      %v368 = vsel %vm366, %v363, %v365
      %372 = vrot.lane.b32.xlu0 %v341, 110
      %v373 = vpop.permute.xlu0 %372
      %374 = vrot.lane.b32.xlu0 %v342, 110
      %v375 = vpop.permute.xlu0 %374
      %376 = vrot.lane.b32.xlu0 %v343, 110
      %v377 = vpop.permute.xlu0 %376
      %vm378 = vcmask 900096
      %v379 = vsel %vm378, %v373, %v375
      %v380 = vsel %vm378, %v375, %v377
      %384 = vrot.lane.b32.xlu0 %v341, 109
      %v385 = vpop.permute.xlu0 %384
      %386 = vrot.lane.b32.xlu0 %v342, 109
      %v387 = vpop.permute.xlu0 %386
      %388 = vrot.lane.b32.xlu0 %v343, 109
      %v389 = vpop.permute.xlu0 %388
      %vm390 = vcmask 891904
      %v391 = vsel %vm390, %v385, %v387
      %v392 = vsel %vm390, %v387, %v389
      %396 = vrot.lane.b32.xlu0 %v341, 108
      %v397 = vpop.permute.xlu0 %396
      %398 = vrot.lane.b32.xlu0 %v342, 108
      %v399 = vpop.permute.xlu0 %398
      %400 = vrot.lane.b32.xlu0 %v343, 108
      %v401 = vpop.permute.xlu0 %400
      %vm402 = vcmask 883712
      %v403 = vsel %vm402, %v397, %v399
      %v404 = vsel %vm402, %v399, %v401
      %408 = vrot.lane.b32.xlu0 %v341, 92
      %v409 = vpop.permute.xlu0 %408
      %410 = vrot.lane.b32.xlu0 %v342, 92
      %v411 = vpop.permute.xlu0 %410
      %412 = vrot.lane.b32.xlu0 %v343, 92
      %v413 = vpop.permute.xlu0 %412
      %vm414 = vcmask 752640
      %v415 = vsel %vm414, %v409, %v411
      %v416 = vsel %vm414, %v411, %v413
      %420 = vrot.lane.b32.xlu0 %v341, 91
      %v421 = vpop.permute.xlu0 %420
      %422 = vrot.lane.b32.xlu0 %v342, 91
      %v423 = vpop.permute.xlu0 %422
      %424 = vrot.lane.b32.xlu0 %v343, 91
      %v425 = vpop.permute.xlu0 %424
      %vm426 = vcmask 744448
      %v427 = vsel %vm426, %v421, %v423
      %v428 = vsel %vm426, %v423, %v425
      %432 = vrot.lane.b32.xlu0 %v341, 90
      %v433 = vpop.permute.xlu0 %432
      %434 = vrot.lane.b32.xlu0 %v342, 90
      %v435 = vpop.permute.xlu0 %434
      %436 = vrot.lane.b32.xlu0 %v343, 90
      %v437 = vpop.permute.xlu0 %436
      %vm438 = vcmask 736256
      %v439 = vsel %vm438, %v433, %v435
      %v440 = vsel %vm438, %v435, %v437
      %vm444 = vcmask 588800
      %v446 = vsel %vm444, %v344, 0
      %448 = vmatprep.subr.mxu0 0.0
      %449 = vmatpush1.msra.mxu0 0.0
      %450 = vmatprep.subr.mxu0 0.0
      %451 = vmatpush1.msra.mxu0 0.0
      %452 = vmatprep.subr.mxu0 0.0
      %453 = vmatpush1.msra.mxu0 0.0
      %454 = vmatprep.subr.mxu0 0.0
      %455 = vmatpush1.msra.mxu0 0.0
      %456 = vmatprep.subr.mxu0 0.0
      %457 = vmatpush1.msra.mxu0 0.0
      %458 = vmatprep.subr.mxu0 0.0
      %459 = vmatpush1.msra.mxu0 0.0
      %460 = vmatprep.subr.mxu0 0.0
      %461 = vmatpush1.msra.mxu0 0.0
      %462 = vmatprep.subr.mxu0 %v440
      %463 = vmatpush1.msra.mxu0 %v439
      %464 = vmatprep.subr.mxu0 %v428
      %465 = vmatpush1.msra.mxu0 %v427
      %466 = vmatprep.subr.mxu0 %v416
      %467 = vmatpush1.msra.mxu0 %v415
      %468 = vmatprep.subr.mxu0 %v404
      %469 = vmatpush1.msra.mxu0 %v403
      %470 = vmatprep.subr.mxu0 %v392
      %471 = vmatpush1.msra.mxu0 %v391
      %472 = vmatprep.subr.mxu0 %v380
      %473 = vmatpush1.msra.mxu0 %v379
      %474 = vmatprep.subr.mxu0 %v368
      %475 = vmatpush1.msra.mxu0 %v367
      %476 = vmatprep.subr.mxu0 %v356
      %477 = vmatpush1.msra.mxu0 %v355
      %478 = vmatprep.subr.mxu0 %v342
      %479 = vmatpush1.msra.mxu0 %v341
      %480 = vmatprep.subr.mxu0 0.0
      %481 = vmatpush2.msra.mxu0 0.0
      %482 = vmatprep.subr.mxu0 0.0
      %483 = vmatpush2.msra.mxu0 0.0
      %484 = vmatprep.subr.mxu0 0.0
      %485 = vmatpush2.msra.mxu0 0.0
      %486 = vmatprep.subr.mxu0 0.0
      %487 = vmatpush2.msra.mxu0 0.0
      %488 = vmatprep.subr.mxu0 0.0
      %489 = vmatpush2.msra.mxu0 0.0
      %490 = vmatprep.subr.mxu0 0.0
      %491 = vmatpush2.msra.mxu0 0.0
      %492 = vmatprep.subr.mxu0 0.0
      %493 = vmatpush2.msra.mxu0 0.0
      %494 = vmatprep.subr.mxu0 0.0
      %495 = vmatpush2.msra.mxu0 0.0
      %496 = vmatprep.subr.mxu0 0.0
      %497 = vmatpush2.msra.mxu0 0.0
      %498 = vmatprep.subr.mxu0 0.0
      %499 = vmatpush2.msra.mxu0 0.0
      %500 = vmatprep.subr.mxu0 0.0
      %501 = vmatpush2.msra.mxu0 0.0
      %502 = vmatprep.subr.mxu0 0.0
      %503 = vmatpush2.msra.mxu0 0.0
      %504 = vmatprep.subr.mxu0 0.0
      %505 = vmatpush2.msra.mxu0 0.0
      %506 = vmatprep.subr.mxu0 0.0
      %507 = vmatpush2.msra.mxu0 0.0
      %508 = vmatprep.subr.mxu0 0.0
      %509 = vmatpush2.msra.mxu0 0.0
      %510 = vmatprep.subr.mxu0 0.0
      %511 = vmatpush2.msra.mxu0 0.0
      %512 = vmatprep.mubr.f32.mxu0 0.0
      %513 = vmatmul.mubr.f32.gmra.mxu0 %v446
      %v514 = vpop.f32.mrf.mxu0
      %v515 = vadd.f32 0.0, %v514
      %v516 = vpop.f32.mrf.mxu0
      %v517 = vadd.f32 0.0, %v516
      %518 = vdwg.mxu0
      %519 = vmatprep.subr.mxu0 0.0
      %520 = vmatpush1.msra.mxu0 0.0
      %521 = vmatprep.subr.mxu0 0.0
      %522 = vmatpush1.msra.mxu0 0.0
      %523 = vmatprep.subr.mxu0 0.0
      %524 = vmatpush1.msra.mxu0 0.0
      %525 = vmatprep.subr.mxu0 0.0
      %526 = vmatpush1.msra.mxu0 0.0
      %527 = vmatprep.subr.mxu0 0.0
      %528 = vmatpush1.msra.mxu0 0.0
      %529 = vmatprep.subr.mxu0 0.0
      %530 = vmatpush1.msra.mxu0 0.0
      %531 = vmatprep.subr.mxu0 0.0
      %532 = vmatpush1.msra.mxu0 0.0
      %533 = vmatprep.subr.mxu0 0.0
      %534 = vmatpush1.msra.mxu0 %v437
      %535 = vmatprep.subr.mxu0 0.0
      %536 = vmatpush1.msra.mxu0 %v425
      %537 = vmatprep.subr.mxu0 0.0
      %538 = vmatpush1.msra.mxu0 %v413
      %539 = vmatprep.subr.mxu0 0.0
      %540 = vmatpush1.msra.mxu0 %v401
      %541 = vmatprep.subr.mxu0 0.0
      %542 = vmatpush1.msra.mxu0 %v389
      %543 = vmatprep.subr.mxu0 0.0
      %544 = vmatpush1.msra.mxu0 %v377
      %545 = vmatprep.subr.mxu0 0.0
      %546 = vmatpush1.msra.mxu0 %v365
      %547 = vmatprep.subr.mxu0 0.0
      %548 = vmatpush1.msra.mxu0 %v353
      %549 = vmatprep.subr.mxu0 0.0
      %550 = vmatpush1.msra.mxu0 %v343
      %551 = vmatprep.subr.mxu0 0.0
      %552 = vmatpush2.msra.mxu0 0.0
      %553 = vmatprep.subr.mxu0 0.0
      %554 = vmatpush2.msra.mxu0 0.0
      %555 = vmatprep.subr.mxu0 0.0
      %556 = vmatpush2.msra.mxu0 0.0
      %557 = vmatprep.subr.mxu0 0.0
      %558 = vmatpush2.msra.mxu0 0.0
      %559 = vmatprep.subr.mxu0 0.0
      %560 = vmatpush2.msra.mxu0 0.0
      %561 = vmatprep.subr.mxu0 0.0
      %562 = vmatpush2.msra.mxu0 0.0
      %563 = vmatprep.subr.mxu0 0.0
      %564 = vmatpush2.msra.mxu0 0.0
      %565 = vmatprep.subr.mxu0 0.0
      %566 = vmatpush2.msra.mxu0 0.0
      %567 = vmatprep.subr.mxu0 0.0
      %568 = vmatpush2.msra.mxu0 0.0
      %569 = vmatprep.subr.mxu0 0.0
      %570 = vmatpush2.msra.mxu0 0.0
      %571 = vmatprep.subr.mxu0 0.0
      %572 = vmatpush2.msra.mxu0 0.0
      %573 = vmatprep.subr.mxu0 0.0
      %574 = vmatpush2.msra.mxu0 0.0
      %575 = vmatprep.subr.mxu0 0.0
      %576 = vmatpush2.msra.mxu0 0.0
      %577 = vmatprep.subr.mxu0 0.0
      %578 = vmatpush2.msra.mxu0 0.0
      %579 = vmatprep.subr.mxu0 0.0
      %580 = vmatpush2.msra.mxu0 0.0
      %581 = vmatprep.subr.mxu0 0.0
      %582 = vmatpush2.msra.mxu0 0.0
      %583 = vmatprep.mubr.f32.mxu0 0.0
      %584 = vmatmul.mubr.f32.gmra.mxu0 %v446
      %v585 = vpop.f32.mrf.mxu0
      %v586 = vadd.f32 0.0, %v585
      %v587 = vpop.f32.mrf.mxu0
      %588 = vdwg.mxu0
      %590 = vrot.lane.b32.xlu0 %v515, 126
      %v591 = vpop.permute.xlu0 %590
      %593 = vrot.lane.b32.xlu0 %v515, 124
      %v594 = vpop.permute.xlu0 %593
      %596 = vrot.lane.b32.xlu0 %v515, 122
      %v597 = vpop.permute.xlu0 %596
      %599 = vrot.lane.b32.xlu0 %v515, 120
      %v600 = vpop.permute.xlu0 %599
      %602 = vrot.lane.b32.xlu0 %v515, 118
      %v603 = vpop.permute.xlu0 %602
      %605 = vrot.lane.b32.xlu0 %v515, 116
      %v606 = vpop.permute.xlu0 %605
      %609 = vrot.lane.b32.xlu0 %v515, 114
      %v610 = vpop.permute.xlu0 %609
      %611 = vrot.lane.b32.xlu0 %v517, 114
      %v612 = vpop.permute.xlu0 %611
      %vm613 = vcmask 932864
      %v614 = vsel %vm613, %v610, %v612
      %616 = vrot.lane.b32.xlu0 %v517, 112
      %v617 = vpop.permute.xlu0 %616
      %619 = vrot.lane.b32.xlu0 %v517, 110
      %v620 = vpop.permute.xlu0 %619
      %622 = vrot.lane.b32.xlu0 %v517, 108
      %v623 = vpop.permute.xlu0 %622
      %625 = vrot.lane.b32.xlu0 %v517, 106
      %v626 = vpop.permute.xlu0 %625
      %628 = vrot.lane.b32.xlu0 %v517, 104
      %v629 = vpop.permute.xlu0 %628
      %631 = vrot.lane.b32.xlu0 %v517, 102
      %v632 = vpop.permute.xlu0 %631
      %635 = vrot.lane.b32.xlu0 %v517, 100
      %v636 = vpop.permute.xlu0 %635
      %637 = vrot.lane.b32.xlu0 %v586, 100
      %v638 = vpop.permute.xlu0 %637
      %vm639 = vcmask 818176
      %v640 = vsel %vm639, %v636, %v638
      %642 = vrot.lane.b32.xlu0 %v586, 98
      %v643 = vpop.permute.xlu0 %642
      %vm645 = vcmask 130048
      %v646 = vsel %vm645, %v515, %v591
      %vm647 = vcmask 261120
      %v648 = vsel %vm647, %v646, %v594
      %vm649 = vcmask 392192
      %v650 = vsel %vm649, %v648, %v597
      %vm651 = vcmask 523264
      %v652 = vsel %vm651, %v650, %v600
      %vm653 = vcmask 654336
      %v654 = vsel %vm653, %v652, %v603
      %vm655 = vcmask 785408
      %v656 = vsel %vm655, %v654, %v606
      %vm657 = vcmask 916480
      %v658 = vsel %vm657, %v656, %v614
      %v659 = vsel %vm645, %v617, %v620
      %v660 = vsel %vm647, %v659, %v623
      %v661 = vsel %vm649, %v660, %v626
      %v662 = vsel %vm651, %v661, %v629
      %v663 = vsel %vm653, %v662, %v632
      %v664 = vsel %vm655, %v663, %v640
      %v665 = vsel %vm657, %v664, %v643
      %666 = vst [vmem:[%s291] sm:$0xff] %v658
      %667 = vst [vmem:[%s291 + $0x8] sm:$0xff] %v665
      %v668 = vadd.f32 %v658, %v665
      %669 = vadd.xlane.f32.xlu0 %v668
      %v670 = vpop.xlane.xlu0 %669
      %vm671 = vcmask 7168
      %672 = vst.msk [vmem:[%s295] sm:$0xff] %vm671, %v670
      %v673 = vmul.f32 %v658, %v658
      %v674 = vmul.f32 %v665, %v665
      %v675 = vadd.f32 %v673, %v674
      %676 = vadd.xlane.f32.xlu0 %v675
      %v677 = vpop.xlane.xlu0 %676
      %678 = vst.msk [vmem:[%s299] sm:$0xff] %vm671, %v677
      %p679 = scmp.lt.s32.totalorder %s19, 1
      %s680 = scalar_select %p679, %s19, 1
      %s681 = smul.addr %s680, 2
      %s682 = smul.addr %s681, 8
      %s683 = scalar_lea.vmem %s5, %s682
      %p684 = scmp.lt.s32.totalorder %s19, 1
      %s685 = scalar_select %p684, %s19, 1
      %s686 = smul.addr %s685, 8
      %s687 = scalar_lea.vmem %s6, %s686
      %p688 = scmp.lt.s32.totalorder %s19, 1
      %s689 = scalar_select %p688, %s19, 1
      %s690 = smul.addr %s689, 8
      %s691 = scalar_lea.vmem %s7, %s690
      // Predicated region
      $region41: #{basic_block_forward.4} parent=39 // pred_check
        %p692 = pneg %p147
      $region42: #{basic_block_forward.4} parent=39 // pred_check_branch
        %694 = sbr.rel (%p692) target = $region44
      $region43: #{basic_block_forward.4} parent=39 // pred_region
        _
      $region44: #{basic_block_forward.4} parent=39 // pred_fallthru
        _
      // Predicated region
      $region45: #{basic_block_forward.4} parent=39 // pred_check
        %p695 = pneg %p173
      $region46: #{basic_block_forward.4} parent=39 // pred_check_branch
        %697 = sbr.rel (%p695) target = $region48
      $region47: #{basic_block_forward.4} parent=39 // pred_region
        _
      $region48: #{basic_block_forward.4} parent=39 // pred_fallthru
        _
      // Predicated region
      $region49: #{basic_block_forward.4} parent=39 // pred_check
        %p698 = pneg %p199
      $region50: #{basic_block_forward.4} parent=39 // pred_check_branch
        %700 = sbr.rel (%p698) target = $region52
      $region51: #{basic_block_forward.4} parent=39 // pred_region
        _
      $region52: #{basic_block_forward.4} parent=39 // pred_fallthru
        _
    $region40: #{basic_block_forward.4} parent=5 // pred_fallthru
      _
    %p701 = scmp.le.s32.totalorder 2, %s14
    // Predicated region
    $region53: #{basic_block_forward.4} parent=5 // pred_check
      %p702 = pneg %p701
    $region54: #{basic_block_forward.4} parent=5 // pred_check_branch
      %704 = sbr.rel (%p702) target = $region56
    $region55: #{basic_block_forward.4} parent=5 // pred_region
      %s705 = ssub.s32 %s14, 2
      // Predicated region
      $region57: #{basic_block_forward.4} parent=55 // pred_check
        %p706 = pneg %p153
      $region58: #{basic_block_forward.4} parent=55 // pred_check_branch
        %708 = sbr.rel (%p706) target = $region60
      $region59: #{basic_block_forward.4} parent=55 // pred_region
        %p709 = scmp.lt.s32.totalorder %s20, 1
        %s710 = scalar_select %p709, %s20, 1
        %s711 = smul.addr %s710, 2
        %s712 = smul.addr %s711, 8
        %s713 = scalar_lea.vmem %s5, %s712
      $region60: #{basic_block_forward.4} parent=55 // pred_fallthru
        _
      // Predicated region
      $region61: #{basic_block_forward.4} parent=55 // pred_check
        %p714 = pneg %p179
      $region62: #{basic_block_forward.4} parent=55 // pred_check_branch
        %716 = sbr.rel (%p714) target = $region64
      $region63: #{basic_block_forward.4} parent=55 // pred_region
        %p717 = scmp.lt.s32.totalorder %s20, 1
        %s718 = scalar_select %p717, %s20, 1
        %s719 = smul.addr %s718, 8
        %s720 = scalar_lea.vmem %s6, %s719
      $region64: #{basic_block_forward.4} parent=55 // pred_fallthru
        _
      // Predicated region
      $region65: #{basic_block_forward.4} parent=55 // pred_check
        %p721 = pneg %p205
      $region66: #{basic_block_forward.4} parent=55 // pred_check_branch
        %723 = sbr.rel (%p721) target = $region68
      $region67: #{basic_block_forward.4} parent=55 // pred_region
        %p724 = scmp.lt.s32.totalorder %s20, 1
        %s725 = scalar_select %p724, %s20, 1
        %s726 = smul.addr %s725, 8
        %s727 = scalar_lea.vmem %s7, %s726
      $region68: #{basic_block_forward.4} parent=55 // pred_fallthru
        _
    $region56: #{basic_block_forward.4} parent=5 // pred_fallthru
      _
  $region6: #{basic_block_forward.4} parent=0 // loop_footer
    %s18 = sadd.s32 1, %s14
  $region7: #{basic_block_forward.4} parent=0 // loop_footer_branch
    %13 = sbr.rel target = $region3
  $region8: #{basic_block_forward.4} parent=0 // loop_exit
    _

// kernel: basic_block_forward.3
$region0: #{basic_block_forward.3}
  #allocation0 [shape = 'u32[]', space=smem, size = 0x4, offset = 0x4, fixed_abs, tag = 'smem constant byte address 0x4 - core index']
  #allocation1 [shape = 'u32[144,128]{1,0:T(1,128)}', space=vmem, size = 0x12000, scoped, tag = 'internal scratch']
  %s0 = inlined_call_operand.vmem [shape: f32[2,4,324], index: 0, kind: input, shape index: {}]
  %s1 = inlined_call_operand.vmem [shape: f32[8,36], index: 1, kind: input, shape index: {}]
  %s2 = inlined_call_operand.vmem [shape: f32[8,4], index: 2, kind: input, shape index: {}]
  %s3 = inlined_call_operand.vmem [shape: f32[1,324], index: 3, kind: input, shape index: {}]
  %s4 = inlined_call_operand.vmem [shape: f32[2,8,324], index: 4, kind: output, shape index: {0}]
  %s5 = inlined_call_operand.vmem [shape: f32[2,8,1], index: 5, kind: output, shape index: {1}]
  %s6 = inlined_call_operand.vmem [shape: f32[2,8,1], index: 6, kind: output, shape index: {2}]
  %s7 = inlined_call_operand.vmem [shape: f32[2,8,1], index: 7, kind: output, shape index: {3}]
  %s8 = inlined_call_operand.vmem [shape: f32[2,8,1], index: 8, kind: output, shape index: {4}]
  %9 = xla_tuple %s4, %s5, %s6, %s7, %s8
  %s10 = sld [smem:[#allocation0]]
  $region81: #{basic_block_forward.3} parent=0
    _
  %s12 = ssub.s32 1, %s10
  %s13 = scalar_select 0, %s12, %s10
  loop: start=0, step=1, limit=4
  $region2: #{basic_block_forward.3} parent=0 // loop_pre_header
    _
  $region3: #{basic_block_forward.3} parent=0 // loop_header
    %s15 = sphi 0, %s19
    %p16 = scmp.ge.s32.totalorder %s15, 4
    %s25 = sphi 0, %s27
    %s28 = sphi 0, %s25
    %s29 = sphi 0, %s28
    %s45 = sphi 0, %s29
    %s49 = sphi 0, %s49
    %s51 = sphi 0, %s49
    %s52 = sphi 0, %s51
    %s66 = sphi 0, %s52
    %s70 = sphi 0, %s70
    %s72 = sphi 0, %s70
    %s73 = sphi 0, %s72
    %s87 = sphi 0, %s73
    %s91 = sphi 0, %s91
    %s93 = sphi 0, %s91
    %s94 = sphi 0, %s93
    %s108 = sphi 0, %s94
    %s114 = sphi 0, %s116
    %s117 = sphi 0, %s114
    %s118 = sphi 0, %s117
    %s134 = sphi 0, %s118
    %s140 = sphi 0, %s142
    %s143 = sphi 0, %s140
    %s144 = sphi 0, %s143
    %s160 = sphi 0, %s144
    %s166 = sphi 0, %s168
    %s169 = sphi 0, %s166
    %s170 = sphi 0, %s169
    %s186 = sphi 0, %s170
    %s192 = sphi 0, %s194
    %s195 = sphi 0, %s192
    %s196 = sphi 0, %s195
    %s212 = sphi 0, %s196
    %s218 = sphi 0, %s220
    %s221 = sphi 0, %s218
    %s222 = sphi 0, %s221
    %s238 = sphi 0, %s222
  $region4: #{basic_block_forward.3} parent=0 // loop_header_branch
    %18 = sbr.rel (%p16) target = $region8
  $region5: #{basic_block_forward.3} parent=0 // loop_body
    %s20 = ssub.s32 %s15, 1
    %s21 = ssub.s32 %s15, 2
    %s22 = sadd.s32 %s15, 1
    %s23 = ssub.s32 %s15, %s22
    %p24 = scmp.eq.s32.totalorder %s23, 0
    %s26 = sadd.s32 %s25, 1
    %s27 = scalar_select %p24, %s25, %s26
    %p30 = pneg %p24
    %p31 = scmp.eq.s32.totalorder %s15, 1
    %p32 = por %p30, %p31
    %p33 = scmp.ne.s32.totalorder %s25, %s28
    %p34 = scmp.eq.s32.totalorder %s15, 0
    %p35 = por %p33, %p34
    %p36 = scmp.ne.s32.totalorder %s25, %s28
    %p37 = scmp.eq.s32.totalorder %s20, 1
    %p38 = por %p36, %p37
    %p39 = scmp.ne.s32.totalorder %s28, %s29
    %p40 = scmp.eq.s32.totalorder %s20, 0
    %p41 = por %p39, %p40
    %p42 = scmp.ne.s32.totalorder %s28, %s29
    %p43 = scmp.eq.s32.totalorder %s21, 1
    %p44 = por %p42, %p43
    %p46 = scmp.ne.s32.totalorder %s29, %s45
    %p47 = scmp.eq.s32.totalorder %s21, 0
    %p48 = por %p46, %p47
    %s50 = sadd.s32 %s49, 1
    %p53 = scmp.eq.s32.totalorder %s15, 1
    %p54 = scmp.ne.s32.totalorder %s49, %s51
    %p55 = scmp.eq.s32.totalorder %s15, 0
    %p56 = por %p54, %p55
    %p57 = scmp.ne.s32.totalorder %s49, %s51
    %p58 = scmp.eq.s32.totalorder %s20, 1
    %p59 = por %p57, %p58
    %p60 = scmp.ne.s32.totalorder %s51, %s52
    %p61 = scmp.eq.s32.totalorder %s20, 0
    %p62 = por %p60, %p61
    %p63 = scmp.ne.s32.totalorder %s51, %s52
    %p64 = scmp.eq.s32.totalorder %s21, 1
    %p65 = por %p63, %p64
    %p67 = scmp.ne.s32.totalorder %s52, %s66
    %p68 = scmp.eq.s32.totalorder %s21, 0
    %p69 = por %p67, %p68
    %s71 = sadd.s32 %s70, 1
    %p74 = scmp.eq.s32.totalorder %s15, 1
    %p75 = scmp.ne.s32.totalorder %s70, %s72
    %p76 = scmp.eq.s32.totalorder %s15, 0
    %p77 = por %p75, %p76
    %p78 = scmp.ne.s32.totalorder %s70, %s72
    %p79 = scmp.eq.s32.totalorder %s20, 1
    %p80 = por %p78, %p79
    %p81 = scmp.ne.s32.totalorder %s72, %s73
    %p82 = scmp.eq.s32.totalorder %s20, 0
    %p83 = por %p81, %p82
    %p84 = scmp.ne.s32.totalorder %s72, %s73
    %p85 = scmp.eq.s32.totalorder %s21, 1
    %p86 = por %p84, %p85
    %p88 = scmp.ne.s32.totalorder %s73, %s87
    %p89 = scmp.eq.s32.totalorder %s21, 0
    %p90 = por %p88, %p89
    %s92 = sadd.s32 %s91, 1
    %p95 = scmp.eq.s32.totalorder %s15, 1
    %p96 = scmp.ne.s32.totalorder %s91, %s93
    %p97 = scmp.eq.s32.totalorder %s15, 0
    %p98 = por %p96, %p97
    %p99 = scmp.ne.s32.totalorder %s91, %s93
    %p100 = scmp.eq.s32.totalorder %s20, 1
    %p101 = por %p99, %p100
    %p102 = scmp.ne.s32.totalorder %s93, %s94
    %p103 = scmp.eq.s32.totalorder %s20, 0
    %p104 = por %p102, %p103
    %p105 = scmp.ne.s32.totalorder %s93, %s94
    %p106 = scmp.eq.s32.totalorder %s21, 1
    %p107 = por %p105, %p106
    %p109 = scmp.ne.s32.totalorder %s94, %s108
    %p110 = scmp.eq.s32.totalorder %s21, 0
    %p111 = por %p109, %p110
    %s112 = ssub.s32 %s15, %s22
    %p113 = scmp.eq.s32.totalorder %s112, 0
    %s115 = sadd.s32 %s114, 1
    %s116 = scalar_select %p113, %s114, %s115
    %p119 = pneg %p113
    %p120 = scmp.eq.s32.totalorder %s15, 1
    %p121 = por %p119, %p120
    %p122 = scmp.ne.s32.totalorder %s114, %s117
    %p123 = scmp.eq.s32.totalorder %s15, 0
    %p124 = por %p122, %p123
    %p125 = scmp.ne.s32.totalorder %s114, %s117
    %p126 = scmp.eq.s32.totalorder %s20, 1
    %p127 = por %p125, %p126
    %p128 = scmp.ne.s32.totalorder %s117, %s118
    %p129 = scmp.eq.s32.totalorder %s20, 0
    %p130 = por %p128, %p129
    %p131 = scmp.ne.s32.totalorder %s117, %s118
    %p132 = scmp.eq.s32.totalorder %s21, 1
    %p133 = por %p131, %p132
    %p135 = scmp.ne.s32.totalorder %s118, %s134
    %p136 = scmp.eq.s32.totalorder %s21, 0
    %p137 = por %p135, %p136
    %s138 = ssub.s32 %s15, %s22
    %p139 = scmp.eq.s32.totalorder %s138, 0
    %s141 = sadd.s32 %s140, 1
    %s142 = scalar_select %p139, %s140, %s141
    %p145 = pneg %p139
    %p146 = scmp.eq.s32.totalorder %s15, 1
    %p147 = por %p145, %p146
    %p148 = scmp.ne.s32.totalorder %s140, %s143
    %p149 = scmp.eq.s32.totalorder %s15, 0
    %p150 = por %p148, %p149
    %p151 = scmp.ne.s32.totalorder %s140, %s143
    %p152 = scmp.eq.s32.totalorder %s20, 1
    %p153 = por %p151, %p152
    %p154 = scmp.ne.s32.totalorder %s143, %s144
    %p155 = scmp.eq.s32.totalorder %s20, 0
    %p156 = por %p154, %p155
    %p157 = scmp.ne.s32.totalorder %s143, %s144
    %p158 = scmp.eq.s32.totalorder %s21, 1
    %p159 = por %p157, %p158
    %p161 = scmp.ne.s32.totalorder %s144, %s160
    %p162 = scmp.eq.s32.totalorder %s21, 0
    %p163 = por %p161, %p162
    %s164 = ssub.s32 %s15, %s22
    %p165 = scmp.eq.s32.totalorder %s164, 0
    %s167 = sadd.s32 %s166, 1
    %s168 = scalar_select %p165, %s166, %s167
    %p171 = pneg %p165
    %p172 = scmp.eq.s32.totalorder %s15, 1
    %p173 = por %p171, %p172
    %p174 = scmp.ne.s32.totalorder %s166, %s169
    %p175 = scmp.eq.s32.totalorder %s15, 0
    %p176 = por %p174, %p175
    %p177 = scmp.ne.s32.totalorder %s166, %s169
    %p178 = scmp.eq.s32.totalorder %s20, 1
    %p179 = por %p177, %p178
    %p180 = scmp.ne.s32.totalorder %s169, %s170
    %p181 = scmp.eq.s32.totalorder %s20, 0
    %p182 = por %p180, %p181
    %p183 = scmp.ne.s32.totalorder %s169, %s170
    %p184 = scmp.eq.s32.totalorder %s21, 1
    %p185 = por %p183, %p184
    %p187 = scmp.ne.s32.totalorder %s170, %s186
    %p188 = scmp.eq.s32.totalorder %s21, 0
    %p189 = por %p187, %p188
    %s190 = ssub.s32 %s15, %s22
    %p191 = scmp.eq.s32.totalorder %s190, 0
    %s193 = sadd.s32 %s192, 1
    %s194 = scalar_select %p191, %s192, %s193
    %p197 = pneg %p191
    %p198 = scmp.eq.s32.totalorder %s15, 1
    %p199 = por %p197, %p198
    %p200 = scmp.ne.s32.totalorder %s192, %s195
    %p201 = scmp.eq.s32.totalorder %s15, 0
    %p202 = por %p200, %p201
    %p203 = scmp.ne.s32.totalorder %s192, %s195
    %p204 = scmp.eq.s32.totalorder %s20, 1
    %p205 = por %p203, %p204
    %p206 = scmp.ne.s32.totalorder %s195, %s196
    %p207 = scmp.eq.s32.totalorder %s20, 0
    %p208 = por %p206, %p207
    %p209 = scmp.ne.s32.totalorder %s195, %s196
    %p210 = scmp.eq.s32.totalorder %s21, 1
    %p211 = por %p209, %p210
    %p213 = scmp.ne.s32.totalorder %s196, %s212
    %p214 = scmp.eq.s32.totalorder %s21, 0
    %p215 = por %p213, %p214
    %s216 = ssub.s32 %s15, %s22
    %p217 = scmp.eq.s32.totalorder %s216, 0
    %s219 = sadd.s32 %s218, 1
    %s220 = scalar_select %p217, %s218, %s219
    %p223 = pneg %p217
    %p224 = scmp.eq.s32.totalorder %s15, 1
    %p225 = por %p223, %p224
    %p226 = scmp.ne.s32.totalorder %s218, %s221
    %p227 = scmp.eq.s32.totalorder %s15, 0
    %p228 = por %p226, %p227
    %p229 = scmp.ne.s32.totalorder %s218, %s221
    %p230 = scmp.eq.s32.totalorder %s20, 1
    %p231 = por %p229, %p230
    %p232 = scmp.ne.s32.totalorder %s221, %s222
    %p233 = scmp.eq.s32.totalorder %s20, 0
    %p234 = por %p232, %p233
    %p235 = scmp.ne.s32.totalorder %s221, %s222
    %p236 = scmp.eq.s32.totalorder %s21, 1
    %p237 = por %p235, %p236
    %p239 = scmp.ne.s32.totalorder %s222, %s238
    %p240 = scmp.eq.s32.totalorder %s21, 0
    %p241 = por %p239, %p240
    %p242 = scmp.le.s32.totalorder 1, %s15
    %p243 = scmp.lt.s32.totalorder %s15, 3
    %p244 = pnand %p242, %p243
    %p245 = pneg %p244
    // Predicated region
    $region9: #{basic_block_forward.3} parent=5 // pred_check
      _
    $region10: #{basic_block_forward.3} parent=5 // pred_check_branch
      %247 = sbr.rel (%p244) target = $region12
    $region11: #{basic_block_forward.3} parent=5 // pred_region
      %s248 = ssub.s32 %s15, 1
      // Predicated region
      $region13: #{basic_block_forward.3} parent=11 // pred_check
        %p249 = pneg %p62
      $region14: #{basic_block_forward.3} parent=11 // pred_check_branch
        %251 = sbr.rel (%p249) target = $region16
      $region15: #{basic_block_forward.3} parent=11 // pred_region
        _
      $region16: #{basic_block_forward.3} parent=11 // pred_fallthru
        _
      // Predicated region
      $region17: #{basic_block_forward.3} parent=11 // pred_check
        %p252 = pneg %p83
      $region18: #{basic_block_forward.3} parent=11 // pred_check_branch
        %254 = sbr.rel (%p252) target = $region20
      $region19: #{basic_block_forward.3} parent=11 // pred_region
        _
      $region20: #{basic_block_forward.3} parent=11 // pred_fallthru
        _
      // Predicated region
      $region21: #{basic_block_forward.3} parent=11 // pred_check
        %p255 = pneg %p104
      $region22: #{basic_block_forward.3} parent=11 // pred_check_branch
        %257 = sbr.rel (%p255) target = $region24
      $region23: #{basic_block_forward.3} parent=11 // pred_region
        _
      $region24: #{basic_block_forward.3} parent=11 // pred_fallthru
        _
    $region12: #{basic_block_forward.3} parent=5 // pred_fallthru
      _
    %p258 = scmp.lt.s32.totalorder %s15, 2
    // Predicated region
    $region25: #{basic_block_forward.3} parent=5 // pred_check
      %p259 = pneg %p258
    $region26: #{basic_block_forward.3} parent=5 // pred_check_branch
      %261 = sbr.rel (%p259) target = $region28
    $region27: #{basic_block_forward.3} parent=5 // pred_region
      // Predicated region
      $region29: #{basic_block_forward.3} parent=27 // pred_check
        %p262 = pneg %p35
      $region30: #{basic_block_forward.3} parent=27 // pred_check_branch
        %264 = sbr.rel (%p262) target = $region32
      $region31: #{basic_block_forward.3} parent=27 // pred_region
        %p265 = scmp.lt.s32.totalorder %s15, 1
        %s266 = scalar_select %p265, %s15, 1
        %s267 = smul.addr %s266, 3
        %s268 = smul.addr %s267, 4
        %s269 = scalar_lea.vmem %s0, %s268
      $region32: #{basic_block_forward.3} parent=27 // pred_fallthru
        _
    $region28: #{basic_block_forward.3} parent=5 // pred_fallthru
      _
    %p270 = scmp.le.s32.totalorder 1, %s15
    %p271 = scmp.lt.s32.totalorder %s15, 3
    %p272 = pnand %p270, %p271
    %p273 = pneg %p272
    // Predicated region
    $region33: #{basic_block_forward.3} parent=5 // pred_check
      _
    $region34: #{basic_block_forward.3} parent=5 // pred_check_branch
      %275 = sbr.rel (%p272) target = $region36
    $region35: #{basic_block_forward.3} parent=5 // pred_region
      %s276 = ssub.s32 %s15, 1
      %p277 = scmp.lt.s32.totalorder %s20, 1
      %s278 = scalar_select %p277, %s20, 1
      %s279 = smul.addr %s278, 3
      %s280 = smul.addr %s279, 4
      %s281 = scalar_lea.vmem %s0, %s280
      %p282 = pneg %p41
      %p283 = pneg %p38
      %p284 = pneg %p62
      %p285 = pneg %p59
      %p286 = pneg %p83
      %p287 = pneg %p80
      %p288 = pneg %p104
      %p289 = pneg %p101
      %p290 = pneg %p130
      %p291 = pneg %p127
      %p292 = scmp.lt.s32.totalorder %s20, 1
      %s293 = scalar_select %p292, %s20, 1
      %s294 = smul.addr %s293, 3
      %s295 = smul.addr %s294, 8
      %s296 = scalar_lea.vmem %s4, %s295
      %p297 = pneg %p156
      %p298 = pneg %p153
      %p299 = scmp.lt.s32.totalorder %s20, 1
      %s300 = scalar_select %p299, %s20, 1
      %s301 = smul.addr %s300, 8
      %s302 = scalar_lea.vmem %s5, %s301
      %p303 = pneg %p182
      %p304 = pneg %p179
      %p305 = scmp.lt.s32.totalorder %s20, 1
      %s306 = scalar_select %p305, %s20, 1
      %s307 = smul.addr %s306, 8
      %s308 = scalar_lea.vmem %s6, %s307
      %p309 = pneg %p208
      %p310 = pneg %p205
      %p311 = scmp.lt.s32.totalorder %s20, 1
      %s312 = scalar_select %p311, %s20, 1
      %s313 = smul.addr %s312, 8
      %s314 = scalar_lea.vmem %s7, %s313
      %p315 = pneg %p234
      %p316 = pneg %p231
      %p317 = scmp.lt.s32.totalorder %s20, 1
      %s318 = scalar_select %p317, %s20, 1
      %s319 = smul.addr %s318, 8
      %s320 = scalar_lea.vmem %s8, %s319
      %p321 = scmp.lt.s32.totalorder %s20, 1
      %s322 = scalar_select %p321, %s20, 1
      %s323 = smul.addr %s322, 3
      %s324 = smul.addr %s323, 4
      %s325 = scalar_lea.vmem %s0, %s324
      %p326 = scmp.lt.s32.totalorder %s20, 1
      %s327 = scalar_select %p326, %s20, 1
      %s328 = smul.addr %s327, 3
      %s329 = smul.addr %s328, 8
      %s330 = scalar_lea.vmem %s4, %s329
      %p331 = scmp.lt.s32.totalorder %s20, 1
      %s332 = scalar_select %p331, %s20, 1
      %s333 = smul.addr %s332, 8
      %s334 = scalar_lea.vmem %s5, %s333
      %p335 = scmp.lt.s32.totalorder %s20, 1
      %s336 = scalar_select %p335, %s20, 1
      %s337 = smul.addr %s336, 8
      %s338 = scalar_lea.vmem %s6, %s337
      %p339 = scmp.lt.s32.totalorder %s20, 1
      %s340 = scalar_select %p339, %s20, 1
      %s341 = smul.addr %s340, 8
      %s342 = scalar_lea.vmem %s7, %s341
      %p343 = scmp.lt.s32.totalorder %s20, 1
      %s344 = scalar_select %p343, %s20, 1
      %s345 = smul.addr %s344, 8
      %s346 = scalar_lea.vmem %s8, %s345
      %v347 = vld [vmem:[%s325] sm:$0xff]
      %v348 = vld [vmem:[%s325 + $0x8] sm:$0xf]
      %v349 = vld [vmem:[%s1] sm:$0xff]
      %v352 = vcombine.high %v347, %v347
      %v354 = vcombine.low %v347, %v347
      %v355 = vcombine.low %v348, %v348
      %356 = vrot.lane.b32.xlu0 %v354, 127
      %v357 = vpop.permute.xlu0 %356
      %358 = vrot.lane.b32.xlu0 %v347, 127
      %v359 = vpop.permute.xlu0 %358
      %360 = vrot.lane.b32.xlu0 %v355, 127
      %v361 = vpop.permute.xlu0 %360
      %vm362 = vcmask 1039360
      %v363 = vsel %vm362, %v357, %v359
      %v364 = vsel %vm362, %v359, %v361
      %368 = vrot.lane.b32.xlu0 %v347, 126
      %v369 = vpop.permute.xlu0 %368
      %370 = vrot.lane.b32.xlu0 %v352, 126
      %v371 = vpop.permute.xlu0 %370
      %372 = vrot.lane.b32.xlu0 %v348, 126
      %v373 = vpop.permute.xlu0 %372
      %vm374 = vcmask 1031168
      %v375 = vsel %vm374, %v369, %v371
      %v376 = vsel %vm374, %v371, %v373
      %380 = vrot.lane.b32.xlu0 %v354, 110
      %v381 = vpop.permute.xlu0 %380
      %382 = vrot.lane.b32.xlu0 %v347, 110
      %v383 = vpop.permute.xlu0 %382
      %384 = vrot.lane.b32.xlu0 %v355, 110
      %v385 = vpop.permute.xlu0 %384
      %vm386 = vcmask 900096
      %v387 = vsel %vm386, %v381, %v383
      %v388 = vsel %vm386, %v383, %v385
      %392 = vrot.lane.b32.xlu0 %v347, 109
      %v393 = vpop.permute.xlu0 %392
      %394 = vrot.lane.b32.xlu0 %v352, 109
      %v395 = vpop.permute.xlu0 %394
      %396 = vrot.lane.b32.xlu0 %v348, 109
      %v397 = vpop.permute.xlu0 %396
      %vm398 = vcmask 891904
      %v399 = vsel %vm398, %v393, %v395
      %v400 = vsel %vm398, %v395, %v397
      %404 = vrot.lane.b32.xlu0 %v354, 108
      %v405 = vpop.permute.xlu0 %404
      %406 = vrot.lane.b32.xlu0 %v347, 108
      %v407 = vpop.permute.xlu0 %406
      %408 = vrot.lane.b32.xlu0 %v355, 108
      %v409 = vpop.permute.xlu0 %408
      %vm410 = vcmask 883712
      %v411 = vsel %vm410, %v405, %v407
      %v412 = vsel %vm410, %v407, %v409
      %416 = vrot.lane.b32.xlu0 %v347, 92
      %v417 = vpop.permute.xlu0 %416
      %418 = vrot.lane.b32.xlu0 %v352, 92
      %v419 = vpop.permute.xlu0 %418
      %420 = vrot.lane.b32.xlu0 %v348, 92
      %v421 = vpop.permute.xlu0 %420
      %vm422 = vcmask 752640
      %v423 = vsel %vm422, %v417, %v419
      %v424 = vsel %vm422, %v419, %v421
      %428 = vrot.lane.b32.xlu0 %v354, 91
      %v429 = vpop.permute.xlu0 %428
      %430 = vrot.lane.b32.xlu0 %v347, 91
      %v431 = vpop.permute.xlu0 %430
      %432 = vrot.lane.b32.xlu0 %v355, 91
      %v433 = vpop.permute.xlu0 %432
      %vm434 = vcmask 744448
      %v435 = vsel %vm434, %v429, %v431
      %v436 = vsel %vm434, %v431, %v433
      %440 = vrot.lane.b32.xlu0 %v347, 90
      %v441 = vpop.permute.xlu0 %440
      %442 = vrot.lane.b32.xlu0 %v352, 90
      %v443 = vpop.permute.xlu0 %442
      %444 = vrot.lane.b32.xlu0 %v348, 90
      %v445 = vpop.permute.xlu0 %444
      %vm446 = vcmask 736256
      %v447 = vsel %vm446, %v441, %v443
      %v448 = vsel %vm446, %v443, %v445
      %vm449 = vcmask 1043456
      %v450 = vsel %vm449, %v347, %v363
      %v451 = vsel %vm449, %v352, %v364
      %v452 = vsel %vm449, %v348, %v361
      %v453 = vsel %vm449, %v375, %v387
      %v454 = vsel %vm449, %v376, %v388
      %v455 = vsel %vm449, %v373, %v385
      %v456 = vsel %vm449, %v399, %v411
      %v457 = vsel %vm449, %v400, %v412
      %v458 = vsel %vm449, %v397, %v409
      %v459 = vsel %vm449, %v423, %v435
      %v460 = vsel %vm449, %v424, %v436
      %v461 = vsel %vm449, %v421, %v433
      %vm462 = vcmask 293888
      %v464 = vsel %vm462, %v349, 0
      %v466 = vsel %vm449, %v447, 0
      %v468 = vsel %vm449, %v448, 0
      %v470 = vsel %vm449, %v445, 0
      %472 = vmatprep.subr.mxu0 0.0
      %473 = vmatpush1.msra.mxu0 0.0
      %474 = vmatprep.subr.mxu0 0.0
      %475 = vmatpush1.msra.mxu0 0.0
      %476 = vmatprep.subr.mxu0 0.0
      %477 = vmatpush1.msra.mxu0 0.0
      %478 = vmatprep.subr.mxu0 0.0
      %479 = vmatpush1.msra.mxu0 0.0
      %480 = vmatprep.subr.mxu0 0.0
      %481 = vmatpush1.msra.mxu0 0.0
      %482 = vmatprep.subr.mxu0 0.0
      %483 = vmatpush1.msra.mxu0 0.0
      %484 = vmatprep.subr.mxu0 0.0
      %485 = vmatpush1.msra.mxu0 0.0
      %486 = vmatprep.subr.mxu0 0.0
      %487 = vmatpush1.msra.mxu0 0.0
      %488 = vmatprep.subr.mxu0 0.0
      %489 = vmatpush1.msra.mxu0 0.0
      %490 = vmatprep.subr.mxu0 0.0
      %491 = vmatpush1.msra.mxu0 0.0
      %492 = vmatprep.subr.mxu0 0.0
      %493 = vmatpush1.msra.mxu0 0.0
      %494 = vmatprep.subr.mxu0 %v468
      %495 = vmatpush1.msra.mxu0 %v466
      %496 = vmatprep.subr.mxu0 %v460
      %497 = vmatpush1.msra.mxu0 %v459
      %498 = vmatprep.subr.mxu0 %v457
      %499 = vmatpush1.msra.mxu0 %v456
      %500 = vmatprep.subr.mxu0 %v454
      %501 = vmatpush1.msra.mxu0 %v453
      %502 = vmatprep.subr.mxu0 %v451
      %503 = vmatpush1.msra.mxu0 %v450
      %504 = vmatprep.subr.mxu0 0.0
      %505 = vmatpush2.msra.mxu0 0.0
      %506 = vmatprep.subr.mxu0 0.0
      %507 = vmatpush2.msra.mxu0 0.0
      %508 = vmatprep.subr.mxu0 0.0
      %509 = vmatpush2.msra.mxu0 0.0
      %510 = vmatprep.subr.mxu0 0.0
      %511 = vmatpush2.msra.mxu0 0.0
      %512 = vmatprep.subr.mxu0 0.0
      %513 = vmatpush2.msra.mxu0 0.0
      %514 = vmatprep.subr.mxu0 0.0
      %515 = vmatpush2.msra.mxu0 0.0
      %516 = vmatprep.subr.mxu0 0.0
      %517 = vmatpush2.msra.mxu0 0.0
      %518 = vmatprep.subr.mxu0 0.0
      %519 = vmatpush2.msra.mxu0 0.0
      %520 = vmatprep.subr.mxu0 0.0
      %521 = vmatpush2.msra.mxu0 0.0
      %522 = vmatprep.subr.mxu0 0.0
      %523 = vmatpush2.msra.mxu0 0.0
      %524 = vmatprep.subr.mxu0 0.0
      %525 = vmatpush2.msra.mxu0 0.0
      %526 = vmatprep.subr.mxu0 0.0
      %527 = vmatpush2.msra.mxu0 0.0
      %528 = vmatprep.subr.mxu0 0.0
      %529 = vmatpush2.msra.mxu0 0.0
      %530 = vmatprep.subr.mxu0 0.0
      %531 = vmatpush2.msra.mxu0 0.0
      %532 = vmatprep.subr.mxu0 0.0
      %533 = vmatpush2.msra.mxu0 0.0
      %534 = vmatprep.subr.mxu0 0.0
      %535 = vmatpush2.msra.mxu0 0.0
      %536 = vmatprep.mubr.f32.mxu0 0.0
      %537 = vmatmul.mubr.f32.gmra.mxu0 %v464
      %v538 = vpop.f32.mrf.mxu0
      %v539 = vadd.f32 0.0, %v538
      %v540 = vpop.f32.mrf.mxu0
      %v541 = vadd.f32 0.0, %v540
      %542 = vdwg.mxu0
      %543 = vmatprep.subr.mxu0 0.0
      %544 = vmatpush1.msra.mxu0 0.0
      %545 = vmatprep.subr.mxu0 0.0
      %546 = vmatpush1.msra.mxu0 0.0
      %547 = vmatprep.subr.mxu0 0.0
      %548 = vmatpush1.msra.mxu0 0.0
      %549 = vmatprep.subr.mxu0 0.0
      %550 = vmatpush1.msra.mxu0 0.0
      %551 = vmatprep.subr.mxu0 0.0
      %552 = vmatpush1.msra.mxu0 0.0
      %553 = vmatprep.subr.mxu0 0.0
      %554 = vmatpush1.msra.mxu0 0.0
      %555 = vmatprep.subr.mxu0 0.0
      %556 = vmatpush1.msra.mxu0 0.0
      %557 = vmatprep.subr.mxu0 0.0
      %558 = vmatpush1.msra.mxu0 0.0
      %559 = vmatprep.subr.mxu0 0.0
      %560 = vmatpush1.msra.mxu0 0.0
      %561 = vmatprep.subr.mxu0 0.0
      %562 = vmatpush1.msra.mxu0 0.0
      %563 = vmatprep.subr.mxu0 0.0
      %564 = vmatpush1.msra.mxu0 0.0
      %565 = vmatprep.subr.mxu0 0.0
      %566 = vmatpush1.msra.mxu0 %v470
      %567 = vmatprep.subr.mxu0 0.0
      %568 = vmatpush1.msra.mxu0 %v461
      %569 = vmatprep.subr.mxu0 0.0
      %570 = vmatpush1.msra.mxu0 %v458
      %571 = vmatprep.subr.mxu0 0.0
      %572 = vmatpush1.msra.mxu0 %v455
      %573 = vmatprep.subr.mxu0 0.0
      %574 = vmatpush1.msra.mxu0 %v452
      %575 = vmatprep.subr.mxu0 0.0
      %576 = vmatpush2.msra.mxu0 0.0
      %577 = vmatprep.subr.mxu0 0.0
      %578 = vmatpush2.msra.mxu0 0.0
      %579 = vmatprep.subr.mxu0 0.0
      %580 = vmatpush2.msra.mxu0 0.0
      %581 = vmatprep.subr.mxu0 0.0
      %582 = vmatpush2.msra.mxu0 0.0
      %583 = vmatprep.subr.mxu0 0.0
      %584 = vmatpush2.msra.mxu0 0.0
      %585 = vmatprep.subr.mxu0 0.0
      %586 = vmatpush2.msra.mxu0 0.0
      %587 = vmatprep.subr.mxu0 0.0
      %588 = vmatpush2.msra.mxu0 0.0
      %589 = vmatprep.subr.mxu0 0.0
      %590 = vmatpush2.msra.mxu0 0.0
      %591 = vmatprep.subr.mxu0 0.0
      %592 = vmatpush2.msra.mxu0 0.0
      %593 = vmatprep.subr.mxu0 0.0
      %594 = vmatpush2.msra.mxu0 0.0
      %595 = vmatprep.subr.mxu0 0.0
      %596 = vmatpush2.msra.mxu0 0.0
      %597 = vmatprep.subr.mxu0 0.0
      %598 = vmatpush2.msra.mxu0 0.0
      %599 = vmatprep.subr.mxu0 0.0
      %600 = vmatpush2.msra.mxu0 0.0
      %601 = vmatprep.subr.mxu0 0.0
      %602 = vmatpush2.msra.mxu0 0.0
      %603 = vmatprep.subr.mxu0 0.0
      %604 = vmatpush2.msra.mxu0 0.0
      %605 = vmatprep.subr.mxu0 0.0
      %606 = vmatpush2.msra.mxu0 0.0
      %607 = vmatprep.mubr.f32.mxu0 0.0
      %608 = vmatmul.mubr.f32.gmra.mxu0 %v464
      %v609 = vpop.f32.mrf.mxu0
      %v610 = vadd.f32 0.0, %v609
      %v611 = vpop.f32.mrf.mxu0
      %612 = vdwg.mxu0
      %616 = vrot.lane.b32.xlu0 %v539, 19
      %v617 = vpop.permute.xlu0 %616
      %618 = vrot.lane.b32.xlu0 %v541, 19
      %v619 = vpop.permute.xlu0 %618
      %620 = vrot.lane.b32.xlu0 %v610, 19
      %v621 = vpop.permute.xlu0 %620
      %vm622 = vcmask 154624
      %v623 = vsel %vm622, %v617, %v619
      %v624 = vsel %vm622, %v619, %v621
      %v628 = vsel %vm622, 0.0, %v617
      %vm629 = vcmask 400384
      %v630 = vsel %vm629, %v624, 0.0
      %v631 = vld [vmem:[%s3] sm:$0x7]
      %v633 = vlaneseq
      %v634 = vshrl.u32 %v633, 7
      %v635 = vsub.s32 0, %v634
      %v636 = vrot.slane %v631, %v635
      %v637 = vlaneseq
      %v638 = vshrl.u32 %v637, 7
      %v639 = vsub.s32 1, %v638
      %v640 = vrot.slane %v631, %v639
      %v641 = vlaneseq
      %v642 = vshrl.u32 %v641, 7
      %v643 = vsub.s32 2, %v642
      %v644 = vrot.slane %v631, %v643
      %v648 = vmul.f32 %v628, %v636
      %v649 = vmul.f32 %v623, %v640
      %v650 = vmul.f32 %v630, %v644
      %651 = vst [vmem:[%s330] sm:$0xff] %v648
      %652 = vst [vmem:[%s330 + $0x8] sm:$0xff] %v649
      %vm653 = vcmask 556032
      %654 = vst.msk [vmem:[%s330 + $0x10] sm:$0xff] %vm653, %v650
      %v655 = vadd.f32 %v648, %v649
      %v656 = vsel %vm653, %v650, 0.0
      %v657 = vadd.f32 %v655, %v656
      %658 = vadd.xlane.f32.xlu0 %v657
      %v659 = vpop.xlane.xlu0 %658
      %vm660 = vcmask 7168
      %661 = vst.msk [vmem:[%s334] sm:$0xff] %vm660, %v659
      %v662 = vmul.f32 %v648, %v648
      %v663 = vmul.f32 %v649, %v649
      %v664 = vmul.f32 %v650, %v650
      %v665 = vadd.f32 %v662, %v663
      %v666 = vsel %vm653, %v664, 0.0
      %v667 = vadd.f32 %v665, %v666
      %668 = vadd.xlane.f32.xlu0 %v667
      %v669 = vpop.xlane.xlu0 %668
      %670 = vst.msk [vmem:[%s338] sm:$0xff] %vm660, %v669
      %v671 = vld [vmem:[%s2] sm:$0xff]
      %vm672 = vcmask 31744
      %v674 = vsel %vm672, %v671, 0
      %v676 = vsel %vm449, %v347, 0
      %v678 = vsel %vm449, %v352, 0
      %v680 = vsel %vm449, %v348, 0
      %682 = vmatprep.subr.mxu0 0.0
      %683 = vmatpush1.msra.mxu0 0.0
      %684 = vmatprep.subr.mxu0 0.0
      %685 = vmatpush1.msra.mxu0 0.0
      %686 = vmatprep.subr.mxu0 0.0
      %687 = vmatpush1.msra.mxu0 0.0
      %688 = vmatprep.subr.mxu0 0.0
      %689 = vmatpush1.msra.mxu0 0.0
      %690 = vmatprep.subr.mxu0 0.0
      %691 = vmatpush1.msra.mxu0 0.0
      %692 = vmatprep.subr.mxu0 0.0
      %693 = vmatpush1.msra.mxu0 0.0
      %694 = vmatprep.subr.mxu0 0.0
      %695 = vmatpush1.msra.mxu0 0.0
      %696 = vmatprep.subr.mxu0 0.0
      %697 = vmatpush1.msra.mxu0 0.0
      %698 = vmatprep.subr.mxu0 0.0
      %699 = vmatpush1.msra.mxu0 0.0
      %700 = vmatprep.subr.mxu0 0.0
      %701 = vmatpush1.msra.mxu0 0.0
      %702 = vmatprep.subr.mxu0 0.0
      %703 = vmatpush1.msra.mxu0 0.0
      %704 = vmatprep.subr.mxu0 0.0
      %705 = vmatpush1.msra.mxu0 0.0
      %706 = vmatprep.subr.mxu0 0.0
      %707 = vmatpush1.msra.mxu0 0.0
      %708 = vmatprep.subr.mxu0 0.0
      %709 = vmatpush1.msra.mxu0 0.0
      %710 = vmatprep.subr.mxu0 0.0
      %711 = vmatpush1.msra.mxu0 0.0
      %712 = vmatprep.subr.mxu0 %v678
      %713 = vmatpush1.msra.mxu0 %v676
      %714 = vmatprep.subr.mxu0 0.0
      %715 = vmatpush2.msra.mxu0 0.0
      %716 = vmatprep.subr.mxu0 0.0
      %717 = vmatpush2.msra.mxu0 0.0
      %718 = vmatprep.subr.mxu0 0.0
      %719 = vmatpush2.msra.mxu0 0.0
      %720 = vmatprep.subr.mxu0 0.0
      %721 = vmatpush2.msra.mxu0 0.0
      %722 = vmatprep.subr.mxu0 0.0
      %723 = vmatpush2.msra.mxu0 0.0
      %724 = vmatprep.subr.mxu0 0.0
      %725 = vmatpush2.msra.mxu0 0.0
      %726 = vmatprep.subr.mxu0 0.0
      %727 = vmatpush2.msra.mxu0 0.0
      %728 = vmatprep.subr.mxu0 0.0
      %729 = vmatpush2.msra.mxu0 0.0
      %730 = vmatprep.subr.mxu0 0.0
      %731 = vmatpush2.msra.mxu0 0.0
      %732 = vmatprep.subr.mxu0 0.0
      %733 = vmatpush2.msra.mxu0 0.0
      %734 = vmatprep.subr.mxu0 0.0
      %735 = vmatpush2.msra.mxu0 0.0
      %736 = vmatprep.subr.mxu0 0.0
      %737 = vmatpush2.msra.mxu0 0.0
      %738 = vmatprep.subr.mxu0 0.0
      %739 = vmatpush2.msra.mxu0 0.0
      %740 = vmatprep.subr.mxu0 0.0
      %741 = vmatpush2.msra.mxu0 0.0
      %742 = vmatprep.subr.mxu0 0.0
      %743 = vmatpush2.msra.mxu0 0.0
      %744 = vmatprep.subr.mxu0 0.0
      %745 = vmatpush2.msra.mxu0 0.0
      %746 = vmatprep.mubr.f32.mxu0 0.0
      %747 = vmatmul.mubr.f32.gmra.mxu0 %v674
      %v748 = vpop.f32.mrf.mxu0
      %v749 = vadd.f32 0.0, %v748
      %v750 = vpop.f32.mrf.mxu0
      %v751 = vadd.f32 0.0, %v750
      %752 = vdwg.mxu0
      %753 = vmatprep.subr.mxu0 0.0
      %754 = vmatpush1.msra.mxu0 0.0
      %755 = vmatprep.subr.mxu0 0.0
      %756 = vmatpush1.msra.mxu0 0.0
      %757 = vmatprep.subr.mxu0 0.0
      %758 = vmatpush1.msra.mxu0 0.0
      %759 = vmatprep.subr.mxu0 0.0
      %760 = vmatpush1.msra.mxu0 0.0
      %761 = vmatprep.subr.mxu0 0.0
      %762 = vmatpush1.msra.mxu0 0.0
      %763 = vmatprep.subr.mxu0 0.0
      %764 = vmatpush1.msra.mxu0 0.0
      %765 = vmatprep.subr.mxu0 0.0
      %766 = vmatpush1.msra.mxu0 0.0
      %767 = vmatprep.subr.mxu0 0.0
      %768 = vmatpush1.msra.mxu0 0.0
      %769 = vmatprep.subr.mxu0 0.0
      %770 = vmatpush1.msra.mxu0 0.0
      %771 = vmatprep.subr.mxu0 0.0
      %772 = vmatpush1.msra.mxu0 0.0
      %773 = vmatprep.subr.mxu0 0.0
      %774 = vmatpush1.msra.mxu0 0.0
      %775 = vmatprep.subr.mxu0 0.0
      %776 = vmatpush1.msra.mxu0 0.0
      %777 = vmatprep.subr.mxu0 0.0
      %778 = vmatpush1.msra.mxu0 0.0
      %779 = vmatprep.subr.mxu0 0.0
      %780 = vmatpush1.msra.mxu0 0.0
      %781 = vmatprep.subr.mxu0 0.0
      %782 = vmatpush1.msra.mxu0 0.0
      %783 = vmatprep.subr.mxu0 0.0
      %784 = vmatpush1.msra.mxu0 %v680
      %785 = vmatprep.subr.mxu0 0.0
      %786 = vmatpush2.msra.mxu0 0.0
      %787 = vmatprep.subr.mxu0 0.0
      %788 = vmatpush2.msra.mxu0 0.0
      %789 = vmatprep.subr.mxu0 0.0
      %790 = vmatpush2.msra.mxu0 0.0
      %791 = vmatprep.subr.mxu0 0.0
      %792 = vmatpush2.msra.mxu0 0.0
      %793 = vmatprep.subr.mxu0 0.0
      %794 = vmatpush2.msra.mxu0 0.0
      %795 = vmatprep.subr.mxu0 0.0
      %796 = vmatpush2.msra.mxu0 0.0
      %797 = vmatprep.subr.mxu0 0.0
      %798 = vmatpush2.msra.mxu0 0.0
      %799 = vmatprep.subr.mxu0 0.0
      %800 = vmatpush2.msra.mxu0 0.0
      %801 = vmatprep.subr.mxu0 0.0
      %802 = vmatpush2.msra.mxu0 0.0
      %803 = vmatprep.subr.mxu0 0.0
      %804 = vmatpush2.msra.mxu0 0.0
      %805 = vmatprep.subr.mxu0 0.0
      %806 = vmatpush2.msra.mxu0 0.0
      %807 = vmatprep.subr.mxu0 0.0
      %808 = vmatpush2.msra.mxu0 0.0
      %809 = vmatprep.subr.mxu0 0.0
      %810 = vmatpush2.msra.mxu0 0.0
      %811 = vmatprep.subr.mxu0 0.0
      %812 = vmatpush2.msra.mxu0 0.0
      %813 = vmatprep.subr.mxu0 0.0
      %814 = vmatpush2.msra.mxu0 0.0
      %815 = vmatprep.subr.mxu0 0.0
      %816 = vmatpush2.msra.mxu0 0.0
      %817 = vmatprep.mubr.f32.mxu0 0.0
      %818 = vmatmul.mubr.f32.gmra.mxu0 %v674
      %v819 = vpop.f32.mrf.mxu0
      %v820 = vadd.f32 0.0, %v819
      %v821 = vpop.f32.mrf.mxu0
      %822 = vdwg.mxu0
      %v823 = vadd.f32 %v749, %v751
      %v824 = vsel %vm653, %v820, 0.0
      %v825 = vadd.f32 %v823, %v824
      %826 = vadd.xlane.f32.xlu0 %v825
      %v827 = vpop.xlane.xlu0 %826
      %828 = vst.msk [vmem:[%s342] sm:$0xff] %vm660, %v827
      %v829 = vmul.f32 %v749, %v749
      %v830 = vmul.f32 %v751, %v751
      %v831 = vmul.f32 %v820, %v820
      %v832 = vadd.f32 %v829, %v830
      %v833 = vsel %vm653, %v831, 0.0
      %v834 = vadd.f32 %v832, %v833
      %835 = vadd.xlane.f32.xlu0 %v834
      %v836 = vpop.xlane.xlu0 %835
      %837 = vst.msk [vmem:[%s346] sm:$0xff] %vm660, %v836
      %p838 = scmp.lt.s32.totalorder %s20, 1
      %s839 = scalar_select %p838, %s20, 1
      %s840 = smul.addr %s839, 3
      %s841 = smul.addr %s840, 8
      %s842 = scalar_lea.vmem %s4, %s841
      %p843 = scmp.lt.s32.totalorder %s20, 1
      %s844 = scalar_select %p843, %s20, 1
      %s845 = smul.addr %s844, 8
      %s846 = scalar_lea.vmem %s5, %s845
      %p847 = scmp.lt.s32.totalorder %s20, 1
      %s848 = scalar_select %p847, %s20, 1
      %s849 = smul.addr %s848, 8
      %s850 = scalar_lea.vmem %s6, %s849
      %p851 = scmp.lt.s32.totalorder %s20, 1
      %s852 = scalar_select %p851, %s20, 1
      %s853 = smul.addr %s852, 8
      %s854 = scalar_lea.vmem %s7, %s853
      %p855 = scmp.lt.s32.totalorder %s20, 1
      %s856 = scalar_select %p855, %s20, 1
      %s857 = smul.addr %s856, 8
      %s858 = scalar_lea.vmem %s8, %s857
      // Predicated region
      $region37: #{basic_block_forward.3} parent=35 // pred_check
        %p859 = pneg %p127
      $region38: #{basic_block_forward.3} parent=35 // pred_check_branch
        %861 = sbr.rel (%p859) target = $region40
      $region39: #{basic_block_forward.3} parent=35 // pred_region
        _
      $region40: #{basic_block_forward.3} parent=35 // pred_fallthru
        _
      // Predicated region
      $region41: #{basic_block_forward.3} parent=35 // pred_check
        %p862 = pneg %p153
      $region42: #{basic_block_forward.3} parent=35 // pred_check_branch
        %864 = sbr.rel (%p862) target = $region44
      $region43: #{basic_block_forward.3} parent=35 // pred_region
        _
      $region44: #{basic_block_forward.3} parent=35 // pred_fallthru
        _
      // Predicated region
      $region45: #{basic_block_forward.3} parent=35 // pred_check
        %p865 = pneg %p179
      $region46: #{basic_block_forward.3} parent=35 // pred_check_branch
        %867 = sbr.rel (%p865) target = $region48
      $region47: #{basic_block_forward.3} parent=35 // pred_region
        _
      $region48: #{basic_block_forward.3} parent=35 // pred_fallthru
        _
      // Predicated region
      $region49: #{basic_block_forward.3} parent=35 // pred_check
        %p868 = pneg %p205
      $region50: #{basic_block_forward.3} parent=35 // pred_check_branch
        %870 = sbr.rel (%p868) target = $region52
      $region51: #{basic_block_forward.3} parent=35 // pred_region
        _
      $region52: #{basic_block_forward.3} parent=35 // pred_fallthru
        _
      // Predicated region
      $region53: #{basic_block_forward.3} parent=35 // pred_check
        %p871 = pneg %p231
      $region54: #{basic_block_forward.3} parent=35 // pred_check_branch
        %873 = sbr.rel (%p871) target = $region56
      $region55: #{basic_block_forward.3} parent=35 // pred_region
        _
      $region56: #{basic_block_forward.3} parent=35 // pred_fallthru
        _
    $region36: #{basic_block_forward.3} parent=5 // pred_fallthru
      _
    %p874 = scmp.le.s32.totalorder 2, %s15
    // Predicated region
    $region57: #{basic_block_forward.3} parent=5 // pred_check
      %p875 = pneg %p874
    $region58: #{basic_block_forward.3} parent=5 // pred_check_branch
      %877 = sbr.rel (%p875) target = $region60
    $region59: #{basic_block_forward.3} parent=5 // pred_region
      %s878 = ssub.s32 %s15, 2
      // Predicated region
      $region61: #{basic_block_forward.3} parent=59 // pred_check
        %p879 = pneg %p133
      $region62: #{basic_block_forward.3} parent=59 // pred_check_branch
        %881 = sbr.rel (%p879) target = $region64
      $region63: #{basic_block_forward.3} parent=59 // pred_region
        %p882 = scmp.lt.s32.totalorder %s21, 1
        %s883 = scalar_select %p882, %s21, 1
        %s884 = smul.addr %s883, 3
        %s885 = smul.addr %s884, 8
        %s886 = scalar_lea.vmem %s4, %s885
      $region64: #{basic_block_forward.3} parent=59 // pred_fallthru
        _
      // Predicated region
      $region65: #{basic_block_forward.3} parent=59 // pred_check
        %p887 = pneg %p159
      $region66: #{basic_block_forward.3} parent=59 // pred_check_branch
        %889 = sbr.rel (%p887) target = $region68
      $region67: #{basic_block_forward.3} parent=59 // pred_region
        %p890 = scmp.lt.s32.totalorder %s21, 1
        %s891 = scalar_select %p890, %s21, 1
        %s892 = smul.addr %s891, 8
        %s893 = scalar_lea.vmem %s5, %s892
      $region68: #{basic_block_forward.3} parent=59 // pred_fallthru
        _
      // Predicated region
      $region69: #{basic_block_forward.3} parent=59 // pred_check
        %p894 = pneg %p185
      $region70: #{basic_block_forward.3} parent=59 // pred_check_branch
        %896 = sbr.rel (%p894) target = $region72
      $region71: #{basic_block_forward.3} parent=59 // pred_region
        %p897 = scmp.lt.s32.totalorder %s21, 1
        %s898 = scalar_select %p897, %s21, 1
        %s899 = smul.addr %s898, 8
        %s900 = scalar_lea.vmem %s6, %s899
      $region72: #{basic_block_forward.3} parent=59 // pred_fallthru
        _
      // Predicated region
      $region73: #{basic_block_forward.3} parent=59 // pred_check
        %p901 = pneg %p211
      $region74: #{basic_block_forward.3} parent=59 // pred_check_branch
        %903 = sbr.rel (%p901) target = $region76
      $region75: #{basic_block_forward.3} parent=59 // pred_region
        %p904 = scmp.lt.s32.totalorder %s21, 1
        %s905 = scalar_select %p904, %s21, 1
        %s906 = smul.addr %s905, 8
        %s907 = scalar_lea.vmem %s7, %s906
      $region76: #{basic_block_forward.3} parent=59 // pred_fallthru
        _
      // Predicated region
      $region77: #{basic_block_forward.3} parent=59 // pred_check
        %p908 = pneg %p237
      $region78: #{basic_block_forward.3} parent=59 // pred_check_branch
        %910 = sbr.rel (%p908) target = $region80
      $region79: #{basic_block_forward.3} parent=59 // pred_region
        %p911 = scmp.lt.s32.totalorder %s21, 1
        %s912 = scalar_select %p911, %s21, 1
        %s913 = smul.addr %s912, 8
        %s914 = scalar_lea.vmem %s8, %s913
      $region80: #{basic_block_forward.3} parent=59 // pred_fallthru
        _
    $region60: #{basic_block_forward.3} parent=5 // pred_fallthru
      _
  $region6: #{basic_block_forward.3} parent=0 // loop_footer
    %s19 = sadd.s32 1, %s15
  $region7: #{basic_block_forward.3} parent=0 // loop_footer_branch
    %14 = sbr.rel target = $region3
  $region8: #{basic_block_forward.3} parent=0 // loop_exit
    _

</llo_original>
